<compile_context>
chip_gen: v5e
topology: v5e:2x2
jax: 0.10.0
libtpu: 0.0.40
codegen_flags: <defaults>
</compile_context>

<pallas_src>
import functools

import jax
import jax.numpy as jnp
from jax.experimental import pallas as pl
from jax.experimental.pallas import tpu as pltpu

LANE = 128


def _round_up(n, m):
    return ((n + m - 1) // m) * m


def _nbytes(shape, dtype):
    n = 1
    for s in shape:
        n *= int(s)
    return n * jnp.dtype(dtype).itemsize


def _num_tensorcores_per_device():
    try:
        return max(1, int(getattr(jax.devices()[0], "num_cores", 1)))
    except Exception:
        return 1


def _pick_batch_block(B):
    """Batch tile: full batch on single-TC chips (maximize MXU M dim); split
    across TensorCores on multi-TC chips (v7x) when the tile stays 8-aligned
    so every block keeps (8,128)-tileability."""
    n_tc = _num_tensorcores_per_device()
    if n_tc >= 2 and B % n_tc == 0 and (B // n_tc) % 8 == 0:
        return B // n_tc
    return B


# ----------------------------------------------------------------------------
# Fused forward kernel: encoder + one S4D block per depth grid step
#                        + (last step) avg-pool + final linear
# ----------------------------------------------------------------------------

def _s4_fused_kernel(x_ref, pm_ref, w_in_ref, b_in_ref, k_ref, dsk_ref,
                     w_ab_ref, b_ab_ref, gam_ref, bet_ref, w_fin_ref,
                     b_fin_ref, o_ref, h_ref, *, d_real, L):
    d = pl.program_id(1)                     # depth (trailing, "arbitrary") axis
    M, Dp = h_ref.shape                      # M = bblk * L

    # --- fused input linear (Linear(2,dim) ∘ encoder Linear(dim,dim)); only at
    #     the first depth step.  Result persists in the VMEM scratch h_ref.
    @pl.when(d == 0)
    def _():
        x2 = x_ref[...]                                          # (M, 2)
        w_in = w_in_ref[...]                                     # (2, Dp)
        h_ref[...] = (x2[:, 0:1] * w_in[0:1, :]
                      + x2[:, 1:2] * w_in[1:2, :] + b_in_ref[...])

    h = h_ref[...]                                               # (M, Dp) f32
    kd = k_ref[0]                                                # (L, Dp) f32

    # --- causal depthwise S4D conv over the whole (M, Dp) batch tile.
    # After j rolls, xr[r] = h[(r - j) mod M]; rows with (r % L) < j are
    # cross-sample wrap rows and are masked to zero, so the result is exactly
    # the per-sample causal convolution.  Fully unrolled (static small L);
    # kernel tap j is a static slice (no kr carry / roll); two partial
    # accumulators shorten the add dependency chain.
    # NOTE: pltpu.roll follows jnp.roll semantics (out[i] = in[i - shift]).
    row_mod = jax.lax.broadcasted_iota(jnp.int32, (M, 1), 0) % L
    acc0 = h * kd[0:1, :]
    acc1 = jnp.zeros_like(acc0)
    xr = h
    for j in range(1, L):
        xr = pltpu.roll(xr, shift=1, axis=0)
        term = jnp.where(row_mod >= j, xr, 0.0) * kd[j:j + 1, :]
        if j % 2:
            acc1 = acc1 + term
        else:
            acc0 = acc0 + term
    y = acc0 + acc1

    # --- D*u skip + GELU (tanh approx; see TODO at top)
    y = jax.nn.gelu(y + h * dsk_ref[0], approximate=True)

    # --- fused 1x1 conv to 2*Dp channels (bf16 MXU, f32 accumulate) + GLU
    z = jnp.dot(y.astype(jnp.bfloat16), w_ab_ref[0],
                preferred_element_type=jnp.float32) + b_ab_ref[0]
    g = z[:, :Dp] * jax.nn.sigmoid(z[:, Dp:])

    # --- residual + post-LayerNorm over the real (unpadded) feature dim.
    #     Padded lanes carry exact zeros through every layer (padded weights /
    #     biases / gamma / beta are zero), so full-lane sums == d_real sums.
    r = g + h
    inv_d = 1.0 / float(d_real)
    mu = jnp.sum(r, axis=-1, keepdims=True) * inv_d
    var = jnp.sum(r * r, axis=-1, keepdims=True) * inv_d - mu * mu
    h_new = (r - mu) * jax.lax.rsqrt(var + 1e-5) * gam_ref[0] + bet_ref[0]
    h_ref[...] = h_new

    # --- last layer: avg-pool over the sequence via a block-diagonal pooling
    #     matmul (no concatenate / reshape), then final linear (bf16 MXU).
    @pl.when(d == pl.num_programs(1) - 1)
    def _():
        pooled = jnp.dot(pm_ref[...], h_new,
                         preferred_element_type=jnp.float32)    # (bblk, Dp)
        out = jnp.dot(pooled.astype(jnp.bfloat16), w_fin_ref[...],
                      preferred_element_type=jnp.float32) + b_fin_ref[...]
        o_ref[...] = out.astype(o_ref.dtype)


def s4_forward_pallas(x2, pool_mat, w_in_p, b_in_p, k_all, dsk_all, w_ab_all,
                      b_ab_all, gam_all, bet_all, w_fin_p, b_fin_p, *,
                      B, L, bblk, d_real, n_class):
    Dp = w_in_p.shape[1]
    NCp = w_fin_p.shape[1]
    depth = k_all.shape[0]
    M = bblk * L
    nb = B // bblk
    grid = (nb, depth)                       # (parallel batch, arbitrary depth)

    cw = lambda b, d: (0, 0)                 # grid-invariant 2D weights
    cl = lambda b, d: (d, 0, 0)              # per-layer (depth-indexed) stacks

    in_specs = [
        pl.BlockSpec((M, 2), lambda b, d: (b, 0)),       # x, flattened (B*L, 2)
        pl.BlockSpec((bblk, M), cw),                     # block-diag avg-pool matrix
        pl.BlockSpec((2, Dp), cw),                       # fused input weight
        pl.BlockSpec((1, Dp), cw),                       # fused input bias
        pl.BlockSpec((1, L, Dp), cl),                    # S4D conv kernel (layer d)
        pl.BlockSpec((1, 1, Dp), cl),                    # D skip
        pl.BlockSpec((1, Dp, 2 * Dp), cl),               # concat GLU weight (bf16)
        pl.BlockSpec((1, 1, 2 * Dp), cl),                # concat GLU bias
        pl.BlockSpec((1, 1, Dp), cl),                    # LN gamma
        pl.BlockSpec((1, 1, Dp), cl),                    # LN beta
        pl.BlockSpec((Dp, NCp), cw),                     # final weight (bf16)
        pl.BlockSpec((1, NCp), cw),                      # final bias
    ]
    out_spec = pl.BlockSpec((bblk, NCp), lambda b, d: (b, 0))

    # VMEM budget derived from actual block bytes (x2 for double buffering)
    # + scratch + intermediate headroom, capped below v7x's 64 MiB/TC.
    args = (x2, pool_mat, w_in_p, b_in_p, k_all, dsk_all, w_ab_all, b_ab_all,
            gam_all, bet_all, w_fin_p, b_fin_p)
    blk_shapes = [(M, 2), (bblk, M), (2, Dp), (1, Dp), (1, L, Dp), (1, 1, Dp),
                  (1, Dp, 2 * Dp), (1, 1, 2 * Dp), (1, 1, Dp), (1, 1, Dp),
                  (Dp, NCp), (1, NCp)]
    io_bytes = sum(_nbytes(s, a.dtype) for s, a in zip(blk_shapes, args))
    io_bytes += _nbytes((bblk, NCp), jnp.float32)                 # output block
    scratch_bytes = _nbytes((M, Dp), jnp.float32)
    work_bytes = 8 * _nbytes((M, 2 * Dp), jnp.float32)            # intermediates
    vmem_limit = int(min(2 * io_bytes + scratch_bytes + work_bytes + (8 << 20),
                         60 << 20))

    kernel = functools.partial(_s4_fused_kernel, d_real=d_real, L=L)

    out = pl.pallas_call(
        kernel,
        out_shape=jax.ShapeDtypeStruct((B, NCp), jnp.float32),
        grid_spec=pltpu.PrefetchScalarGridSpec(
            num_scalar_prefetch=0,
            grid=grid,
            in_specs=in_specs,
            out_specs=out_spec,
            scratch_shapes=[pltpu.VMEM((M, Dp), jnp.float32)]),
        compiler_params=pltpu.CompilerParams(
            dimension_semantics=("parallel", "arbitrary"),
            vmem_limit_bytes=vmem_limit),
    )(*args)
    return out[:, :n_class]


# ----------------------------------------------------------------------------
# Plain-JAX parameter transforms (S4D SSM kernel generation, padding, fusion)
# ----------------------------------------------------------------------------

def s4d_conv_kernel(log_dt, log_A_real, A_imag, C_re, C_im, L):
    """Length-L S4D convolution kernel, shape (D, L)."""
    dt = jnp.exp(log_dt)                                   # (D,)
    A = -jnp.exp(log_A_real) + 1j * A_imag                 # (D, N)
    C = (C_re + 1j * C_im).astype(jnp.complex64)           # (D, N)
    dtA = A * dt[:, None]                                  # (D, N)
    K = dtA[:, :, None] * jnp.arange(L)[None, None, :]     # (D, N, L)
    C2 = C * (jnp.exp(dtA) - 1.0) / A
    k = 2.0 * jnp.einsum('dn,dnl->dl', C2, jnp.exp(K)).real
    return k.astype(jnp.float32)


def _prepare_inputs(params, L, Dp, NCp):
    D = params['w_enc'].shape[0]
    n_class = params['w_fin'].shape[1]
    # Fuse the two input linears exactly: x @ (w_in @ w_enc) + (b_in @ w_enc + b_enc)
    w_in_f = params['w_in'] @ params['w_enc']
    b_in_f = params['b_in'] @ params['w_enc'] + params['b_enc']
    w_in_p = jnp.zeros((2, Dp), jnp.float32).at[:, :D].set(w_in_f)
    b_in_p = jnp.zeros((1, Dp), jnp.float32).at[0, :D].set(b_in_f)

    k_l, dsk_l, wab_l, bab_l, gam_l, bet_l = [], [], [], [], [], []
    for lp in params['layers']:
        k = s4d_conv_kernel(lp['log_dt'], lp['log_A_real'], lp['A_imag'],
                            lp['C_re'], lp['C_im'], L)           # (D, L)
        k_l.append(jnp.zeros((L, Dp), jnp.float32).at[:, :D].set(k.T))
        dsk_l.append(jnp.zeros((1, Dp), jnp.float32).at[0, :D].set(lp['D_skip']))
        wab = jnp.zeros((Dp, 2 * Dp), jnp.float32)
        wab = wab.at[:D, :D].set(lp['w_a']).at[:D, Dp:Dp + D].set(lp['w_b'])
        wab_l.append(wab)
        bab = jnp.zeros((1, 2 * Dp), jnp.float32)
        bab = bab.at[0, :D].set(lp['b_a']).at[0, Dp:Dp + D].set(lp['b_b'])
        bab_l.append(bab)
        gam_l.append(jnp.zeros((1, Dp), jnp.float32).at[0, :D].set(lp['gamma']))
        bet_l.append(jnp.zeros((1, Dp), jnp.float32).at[0, :D].set(lp['beta']))

    w_fin_p = jnp.zeros((Dp, NCp), jnp.float32).at[:D, :n_class].set(params['w_fin'])
    b_fin_p = jnp.zeros((1, NCp), jnp.float32).at[0, :n_class].set(params['b_fin'])
    # bf16 MXU operands (weights); biases / VPU math stay f32.
    return (w_in_p, b_in_p, jnp.stack(k_l), jnp.stack(dsk_l),
            jnp.stack(wab_l).astype(jnp.bfloat16), jnp.stack(bab_l),
            jnp.stack(gam_l), jnp.stack(bet_l),
            w_fin_p.astype(jnp.bfloat16), b_fin_p)


# ----------------------------------------------------------------------------
# Parameter init (deterministic, synthetic)
# ----------------------------------------------------------------------------

def init_params(key, dim, depth, n_class, d_state=16):
    ks = jax.random.split(key, 4 + depth)
    p = {
        'w_in':  jax.random.normal(ks[0], (2, dim), jnp.float32) / jnp.sqrt(2.0),
        'b_in':  jnp.zeros((dim,), jnp.float32),
        'w_enc': jax.random.normal(ks[1], (dim, dim), jnp.float32) / jnp.sqrt(float(dim)),
        'b_enc': jnp.zeros((dim,), jnp.float32),
        'w_fin': jax.random.normal(ks[2], (dim, n_class), jnp.float32) / jnp.sqrt(float(dim)),
        'b_fin': jnp.zeros((n_class,), jnp.float32),
        'layers': [],
    }
    for i in range(depth):
        lk = jax.random.split(ks[3 + i], 6)
        p['layers'].append(dict(
            log_dt=jnp.log(1e-2) + 0.1 * jax.random.normal(lk[0], (dim,), jnp.float32),
            log_A_real=jnp.log(0.5 * jnp.ones((dim, d_state), jnp.float32)),
            A_imag=jnp.pi * jnp.tile(jnp.arange(d_state, dtype=jnp.float32)[None, :], (dim, 1)),
            C_re=jax.random.normal(lk[1], (dim, d_state), jnp.float32) * (0.5 ** 0.5),
            C_im=jax.random.normal(lk[2], (dim, d_state), jnp.float32) * (0.5 ** 0.5),
            D_skip=jax.random.normal(lk[3], (dim,), jnp.float32),
            w_a=jax.random.normal(lk[4], (dim, dim), jnp.float32) / jnp.sqrt(float(dim)),
            b_a=jnp.zeros((dim,), jnp.float32),
            w_b=jax.random.normal(lk[5], (dim, dim), jnp.float32) / jnp.sqrt(float(dim)),
            b_b=jnp.zeros((dim,), jnp.float32),
            gamma=jnp.ones((dim,), jnp.float32),
            beta=jnp.zeros((dim,), jnp.float32),
        ))
    return p


# ----------------------------------------------------------------------------
# Full forward (problem='adding', pooling='avg')
# ----------------------------------------------------------------------------

@jax.jit
def s4_model_forward(x, params):
    B, L, _ = x.shape
    D = params['w_enc'].shape[0]
    n_class = params['w_fin'].shape[1]
    Dp = _round_up(D, LANE)
    NCp = _round_up(n_class, LANE)
    bblk = _pick_batch_block(B)
    ins = _prepare_inputs(params, L, Dp, NCp)

    # Flatten x in the wrapper (free XLA reshape) -> no in-kernel reshape.
    x2 = x.reshape(B * L, 2)
    # Block-diagonal average-pool matrix for one batch tile: row bb averages
    # rows [bb*L, (bb+1)*L) of the (bblk*L, Dp) activation.
    owner = jnp.arange(bblk * L, dtype=jnp.int32) // L
    pool_mat = (owner[None, :] == jnp.arange(bblk, dtype=jnp.int32)[:, None])
    pool_mat = pool_mat.astype(jnp.float32) / float(L)

    return s4_forward_pallas(x2, pool_mat, *ins, B=B, L=L, bblk=bblk,
                             d_real=D, n_class=n_class)


if __name__ == "__main__":
    B, n_vec, dim, depth, n_class = 2, 16, 32, 2, 4   # heads / vocab_size unused
    key = jax.random.PRNGKey(0)
    kx, kp = jax.random.split(key)
    x = jax.random.normal(kx, (B, n_vec, 2), jnp.float32)
    params = init_params(kp, dim, depth, n_class)
    out = s4_model_forward(x, params)
    out = jax.block_until_ready(out)
    assert out.shape == (B, n_class), out.shape
    assert bool(jnp.all(jnp.isfinite(out)))
    print("KERNEL_OK")
</pallas_src>

<mosaic_0001>
module attributes {stable_mosaic.version = 11 : i64} {
  func.func @_s4_fused_kernel(%arg0: i32, %arg1: i32, %arg2: memref<32x2xf32, #tpu.memory_space<vmem>>, %arg3: memref<2x32xf32, #tpu.memory_space<vmem>>, %arg4: memref<2x128xf32, #tpu.memory_space<vmem>>, %arg5: memref<1x128xf32, #tpu.memory_space<vmem>>, %arg6: memref<1x16x128xf32, #tpu.memory_space<vmem>>, %arg7: memref<1x1x128xf32, #tpu.memory_space<vmem>>, %arg8: memref<1x128x256xbf16, #tpu.memory_space<vmem>>, %arg9: memref<1x1x256xf32, #tpu.memory_space<vmem>>, %arg10: memref<1x1x128xf32, #tpu.memory_space<vmem>>, %arg11: memref<1x1x128xf32, #tpu.memory_space<vmem>>, %arg12: memref<128x128xbf16, #tpu.memory_space<vmem>>, %arg13: memref<1x128xf32, #tpu.memory_space<vmem>>, %arg14: memref<2x128xf32, #tpu.memory_space<vmem>>, %arg15: memref<32x128xf32, #tpu.memory_space<vmem>>) attributes {dimension_semantics = [#tpu.dimension_semantics<parallel>, #tpu.dimension_semantics<arbitrary>], iteration_bounds = array<i64: 1, 2>, scalar_prefetch = 0 : i64, scratch_operands = 1 : i64, tpu.core_type = #tpu.core_type<tc>, window_params = [{transform_indices = @transform_0, window_bounds = array<i64: 32, 2>}, {pipeline_mode = #tpu.pipeline_mode<synchronous>, transform_indices = @transform_1, window_bounds = array<i64: 2, 32>}, {pipeline_mode = #tpu.pipeline_mode<synchronous>, transform_indices = @transform_2, window_bounds = array<i64: 2, 128>}, {pipeline_mode = #tpu.pipeline_mode<synchronous>, transform_indices = @transform_3, window_bounds = array<i64: 1, 128>}, {transform_indices = @transform_4, window_bounds = array<i64: 1, 16, 128>}, {transform_indices = @transform_5, window_bounds = array<i64: 1, 1, 128>}, {transform_indices = @transform_6, window_bounds = array<i64: 1, 128, 256>}, {transform_indices = @transform_7, window_bounds = array<i64: 1, 1, 256>}, {transform_indices = @transform_8, window_bounds = array<i64: 1, 1, 128>}, {transform_indices = @transform_9, window_bounds = array<i64: 1, 1, 128>}, {pipeline_mode = #tpu.pipeline_mode<synchronous>, transform_indices = @transform_10, window_bounds = array<i64: 128, 128>}, {pipeline_mode = #tpu.pipeline_mode<synchronous>, transform_indices = @transform_11, window_bounds = array<i64: 1, 128>}, {transform_indices = @transform_12, window_bounds = array<i64: 2, 128>}]} {
    %c0_i32 = arith.constant 0 : i32
    %0 = arith.cmpi eq, %arg1, %c0_i32 : i32
    %1 = arith.extui %0 : i1 to i32
    %c0_i32_0 = arith.constant 0 : i32
    %2 = arith.cmpi ne, %1, %c0_i32_0 : i32
    scf.if %2 {
      %c0_70 = arith.constant 0 : index
      %c0_71 = arith.constant 0 : index
      %258 = vector.load %arg2[%c0_70, %c0_71] : memref<32x2xf32, #tpu.memory_space<vmem>>, vector<32x2xf32>
      %c0_72 = arith.constant 0 : index
      %c0_73 = arith.constant 0 : index
      %259 = vector.load %arg4[%c0_72, %c0_73] : memref<2x128xf32, #tpu.memory_space<vmem>>, vector<2x128xf32>
      %260 = vector.extract_strided_slice %258 {offsets = [0, 0], sizes = [32, 1], strides = [1, 1]} : vector<32x2xf32> to vector<32x1xf32>
      %261 = vector.extract_strided_slice %259 {offsets = [0, 0], sizes = [1, 128], strides = [1, 1]} : vector<2x128xf32> to vector<1x128xf32>
      %262 = vector.broadcast %260 : vector<32x1xf32> to vector<32x128xf32>
      %263 = vector.broadcast %261 : vector<1x128xf32> to vector<32x128xf32>
      %264 = arith.mulf %262, %263 : vector<32x128xf32>
      %265 = vector.extract_strided_slice %258 {offsets = [0, 1], sizes = [32, 1], strides = [1, 1]} : vector<32x2xf32> to vector<32x1xf32>
      %266 = vector.extract_strided_slice %259 {offsets = [1, 0], sizes = [1, 128], strides = [1, 1]} : vector<2x128xf32> to vector<1x128xf32>
      %267 = vector.broadcast %265 : vector<32x1xf32> to vector<32x128xf32>
      %268 = vector.broadcast %266 : vector<1x128xf32> to vector<32x128xf32>
      %269 = arith.mulf %267, %268 : vector<32x128xf32>
      %270 = arith.addf %264, %269 : vector<32x128xf32>
      %c0_74 = arith.constant 0 : index
      %c0_75 = arith.constant 0 : index
      %271 = vector.load %arg5[%c0_74, %c0_75] : memref<1x128xf32, #tpu.memory_space<vmem>>, vector<1x128xf32>
      %272 = vector.broadcast %271 : vector<1x128xf32> to vector<32x128xf32>
      %273 = arith.addf %270, %272 : vector<32x128xf32>
      %c0_76 = arith.constant 0 : index
      %c0_77 = arith.constant 0 : index
      %274 = vector.load %arg15[%c0_76, %c0_77] : memref<32x128xf32, #tpu.memory_space<vmem>>, vector<32x128xf32>
      tpu.vector_store %arg15[%c0_76, %c0_77], %273 {strides = array<i32>} : memref<32x128xf32, #tpu.memory_space<vmem>>, vector<32x128xf32>,
    } else {
    }
    %c0 = arith.constant 0 : index
    %c0_1 = arith.constant 0 : index
    %3 = vector.load %arg15[%c0, %c0_1] : memref<32x128xf32, #tpu.memory_space<vmem>>, vector<32x128xf32>
    %c0_2 = arith.constant 0 : index
    %c0_3 = arith.constant 0 : index
    %c0_4 = arith.constant 0 : index
    %4 = vector.load %arg6[%c0_2, %c0_3, %c0_4] : memref<1x16x128xf32, #tpu.memory_space<vmem>>, vector<1x16x128xf32>
    %5 = vector.shape_cast %4 : vector<1x16x128xf32> to vector<16x128xf32>
    %6 = tpu.iota {dimensions = array<i32: 0>} : vector<32x1xi32>
    %c16_i32 = arith.constant 16 : i32
    %c0_i32_5 = arith.constant 0 : i32
    %7 = arith.cmpi eq, %c16_i32, %c0_i32_5 : i32
    %c1_i32 = arith.constant 1 : i32
    %8 = arith.select %7, %c1_i32, %c16_i32 : i32
    %9 = vector.broadcast %8 : i32 to vector<32x1xi32>
    %10 = arith.remsi %6, %9 : vector<32x1xi32>
    %c0_i32_6 = arith.constant 0 : i32
    %11 = vector.broadcast %c0_i32_6 : i32 to vector<32x1xi32>
    %12 = arith.cmpi ne, %10, %11 : vector<32x1xi32>
    %c0_i32_7 = arith.constant 0 : i32
    %13 = vector.broadcast %c0_i32_7 : i32 to vector<32x1xi32>
    %14 = arith.cmpi slt, %10, %13 : vector<32x1xi32>
    %c0_i32_8 = arith.constant 0 : i32
    %15 = arith.cmpi slt, %8, %c0_i32_8 : i32
    %16 = vector.broadcast %15 : i1 to vector<32x1xi1>
    %17 = vector.broadcast %16 : vector<32x1xi1> to vector<32x1xi1>
    %18 = arith.xori %14, %17 : vector<32x1xi1>
    %19 = arith.andi %18, %12 : vector<32x1xi1>
    %20 = vector.broadcast %8 : i32 to vector<32x1xi32>
    %21 = arith.addi %10, %20 : vector<32x1xi32>
    %22 = arith.select %19, %21, %10 : vector<32x1xi1>, vector<32x1xi32>
    %23 = vector.extract_strided_slice %5 {offsets = [0, 0], sizes = [1, 128], strides = [1, 1]} : vector<16x128xf32> to vector<1x128xf32>
    %24 = vector.broadcast %23 : vector<1x128xf32> to vector<32x128xf32>
    %25 = arith.mulf %3, %24 : vector<32x128xf32>
    %cst = arith.constant 0.000000e+00 : f32
    %26 = vector.broadcast %cst : f32 to vector<32x128xf32>
    %c1_i32_9 = arith.constant 1 : i32
    %27 = tpu.dynamic_rotate %3 by %c1_i32_9 dim 0 : vector<32x128xf32>, i32 -> vector<32x128xf32>
    %c1_i32_10 = arith.constant 1 : i32
    %28 = vector.broadcast %c1_i32_10 : i32 to vector<32x1xi32>
    %29 = arith.cmpi sge, %22, %28 : vector<32x1xi32>
    %cst_11 = arith.constant 0.000000e+00 : f32
    %30 = vector.shape_cast %29 : vector<32x1xi1> to vector<32x1xi1>
    %31 = vector.broadcast %30 : vector<32x1xi1> to vector<32x128xi1>
    %32 = vector.broadcast %cst_11 : f32 to vector<32x128xf32>
    %33 = arith.select %31, %27, %32 : vector<32x128xi1>, vector<32x128xf32>
    %34 = vector.extract_strided_slice %5 {offsets = [1, 0], sizes = [1, 128], strides = [1, 1]} : vector<16x128xf32> to vector<1x128xf32>
    %35 = vector.broadcast %34 : vector<1x128xf32> to vector<32x128xf32>
    %36 = arith.mulf %33, %35 : vector<32x128xf32>
    %37 = arith.addf %26, %36 : vector<32x128xf32>
    %c1_i32_12 = arith.constant 1 : i32
    %38 = tpu.dynamic_rotate %27 by %c1_i32_12 dim 0 : vector<32x128xf32>, i32 -> vector<32x128xf32>
    %c2_i32 = arith.constant 2 : i32
    %39 = vector.broadcast %c2_i32 : i32 to vector<32x1xi32>
    %40 = arith.cmpi sge, %22, %39 : vector<32x1xi32>
    %cst_13 = arith.constant 0.000000e+00 : f32
    %41 = vector.shape_cast %40 : vector<32x1xi1> to vector<32x1xi1>
    %42 = vector.broadcast %41 : vector<32x1xi1> to vector<32x128xi1>
    %43 = vector.broadcast %cst_13 : f32 to vector<32x128xf32>
    %44 = arith.select %42, %38, %43 : vector<32x128xi1>, vector<32x128xf32>
    %45 = vector.extract_strided_slice %5 {offsets = [2, 0], sizes = [1, 128], strides = [1, 1]} : vector<16x128xf32> to vector<1x128xf32>
    %46 = vector.broadcast %45 : vector<1x128xf32> to vector<32x128xf32>
    %47 = arith.mulf %44, %46 : vector<32x128xf32>
    %48 = arith.addf %25, %47 : vector<32x128xf32>
    %c1_i32_14 = arith.constant 1 : i32
    %49 = tpu.dynamic_rotate %38 by %c1_i32_14 dim 0 : vector<32x128xf32>, i32 -> vector<32x128xf32>
    %c3_i32 = arith.constant 3 : i32
    %50 = vector.broadcast %c3_i32 : i32 to vector<32x1xi32>
    %51 = arith.cmpi sge, %22, %50 : vector<32x1xi32>
    %cst_15 = arith.constant 0.000000e+00 : f32
    %52 = vector.shape_cast %51 : vector<32x1xi1> to vector<32x1xi1>
    %53 = vector.broadcast %52 : vector<32x1xi1> to vector<32x128xi1>
    %54 = vector.broadcast %cst_15 : f32 to vector<32x128xf32>
    %55 = arith.select %53, %49, %54 : vector<32x128xi1>, vector<32x128xf32>
    %56 = vector.extract_strided_slice %5 {offsets = [3, 0], sizes = [1, 128], strides = [1, 1]} : vector<16x128xf32> to vector<1x128xf32>
    %57 = vector.broadcast %56 : vector<1x128xf32> to vector<32x128xf32>
    %58 = arith.mulf %55, %57 : vector<32x128xf32>
    %59 = arith.addf %37, %58 : vector<32x128xf32>
    %c1_i32_16 = arith.constant 1 : i32
    %60 = tpu.dynamic_rotate %49 by %c1_i32_16 dim 0 : vector<32x128xf32>, i32 -> vector<32x128xf32>
    %c4_i32 = arith.constant 4 : i32
    %61 = vector.broadcast %c4_i32 : i32 to vector<32x1xi32>
    %62 = arith.cmpi sge, %22, %61 : vector<32x1xi32>
    %cst_17 = arith.constant 0.000000e+00 : f32
    %63 = vector.shape_cast %62 : vector<32x1xi1> to vector<32x1xi1>
    %64 = vector.broadcast %63 : vector<32x1xi1> to vector<32x128xi1>
    %65 = vector.broadcast %cst_17 : f32 to vector<32x128xf32>
    %66 = arith.select %64, %60, %65 : vector<32x128xi1>, vector<32x128xf32>
    %67 = vector.extract_strided_slice %5 {offsets = [4, 0], sizes = [1, 128], strides = [1, 1]} : vector<16x128xf32> to vector<1x128xf32>
    %68 = vector.broadcast %67 : vector<1x128xf32> to vector<32x128xf32>
    %69 = arith.mulf %66, %68 : vector<32x128xf32>
    %70 = arith.addf %48, %69 : vector<32x128xf32>
    %c1_i32_18 = arith.constant 1 : i32
    %71 = tpu.dynamic_rotate %60 by %c1_i32_18 dim 0 : vector<32x128xf32>, i32 -> vector<32x128xf32>
    %c5_i32 = arith.constant 5 : i32
    %72 = vector.broadcast %c5_i32 : i32 to vector<32x1xi32>
    %73 = arith.cmpi sge, %22, %72 : vector<32x1xi32>
    %cst_19 = arith.constant 0.000000e+00 : f32
    %74 = vector.shape_cast %73 : vector<32x1xi1> to vector<32x1xi1>
    %75 = vector.broadcast %74 : vector<32x1xi1> to vector<32x128xi1>
    %76 = vector.broadcast %cst_19 : f32 to vector<32x128xf32>
    %77 = arith.select %75, %71, %76 : vector<32x128xi1>, vector<32x128xf32>
    %78 = vector.extract_strided_slice %5 {offsets = [5, 0], sizes = [1, 128], strides = [1, 1]} : vector<16x128xf32> to vector<1x128xf32>
    %79 = vector.broadcast %78 : vector<1x128xf32> to vector<32x128xf32>
    %80 = arith.mulf %77, %79 : vector<32x128xf32>
    %81 = arith.addf %59, %80 : vector<32x128xf32>
    %c1_i32_20 = arith.constant 1 : i32
    %82 = tpu.dynamic_rotate %71 by %c1_i32_20 dim 0 : vector<32x128xf32>, i32 -> vector<32x128xf32>
    %c6_i32 = arith.constant 6 : i32
    %83 = vector.broadcast %c6_i32 : i32 to vector<32x1xi32>
    %84 = arith.cmpi sge, %22, %83 : vector<32x1xi32>
    %cst_21 = arith.constant 0.000000e+00 : f32
    %85 = vector.shape_cast %84 : vector<32x1xi1> to vector<32x1xi1>
    %86 = vector.broadcast %85 : vector<32x1xi1> to vector<32x128xi1>
    %87 = vector.broadcast %cst_21 : f32 to vector<32x128xf32>
    %88 = arith.select %86, %82, %87 : vector<32x128xi1>, vector<32x128xf32>
    %89 = vector.extract_strided_slice %5 {offsets = [6, 0], sizes = [1, 128], strides = [1, 1]} : vector<16x128xf32> to vector<1x128xf32>
    %90 = vector.broadcast %89 : vector<1x128xf32> to vector<32x128xf32>
    %91 = arith.mulf %88, %90 : vector<32x128xf32>
    %92 = arith.addf %70, %91 : vector<32x128xf32>
    %c1_i32_22 = arith.constant 1 : i32
    %93 = tpu.dynamic_rotate %82 by %c1_i32_22 dim 0 : vector<32x128xf32>, i32 -> vector<32x128xf32>
    %c7_i32 = arith.constant 7 : i32
    %94 = vector.broadcast %c7_i32 : i32 to vector<32x1xi32>
    %95 = arith.cmpi sge, %22, %94 : vector<32x1xi32>
    %cst_23 = arith.constant 0.000000e+00 : f32
    %96 = vector.shape_cast %95 : vector<32x1xi1> to vector<32x1xi1>
    %97 = vector.broadcast %96 : vector<32x1xi1> to vector<32x128xi1>
    %98 = vector.broadcast %cst_23 : f32 to vector<32x128xf32>
    %99 = arith.select %97, %93, %98 : vector<32x128xi1>, vector<32x128xf32>
    %100 = vector.extract_strided_slice %5 {offsets = [7, 0], sizes = [1, 128], strides = [1, 1]} : vector<16x128xf32> to vector<1x128xf32>
    %101 = vector.broadcast %100 : vector<1x128xf32> to vector<32x128xf32>
    %102 = arith.mulf %99, %101 : vector<32x128xf32>
    %103 = arith.addf %81, %102 : vector<32x128xf32>
    %c1_i32_24 = arith.constant 1 : i32
    %104 = tpu.dynamic_rotate %93 by %c1_i32_24 dim 0 : vector<32x128xf32>, i32 -> vector<32x128xf32>
    %c8_i32 = arith.constant 8 : i32
    %105 = vector.broadcast %c8_i32 : i32 to vector<32x1xi32>
    %106 = arith.cmpi sge, %22, %105 : vector<32x1xi32>
    %cst_25 = arith.constant 0.000000e+00 : f32
    %107 = vector.shape_cast %106 : vector<32x1xi1> to vector<32x1xi1>
    %108 = vector.broadcast %107 : vector<32x1xi1> to vector<32x128xi1>
    %109 = vector.broadcast %cst_25 : f32 to vector<32x128xf32>
    %110 = arith.select %108, %104, %109 : vector<32x128xi1>, vector<32x128xf32>
    %111 = vector.extract_strided_slice %5 {offsets = [8, 0], sizes = [1, 128], strides = [1, 1]} : vector<16x128xf32> to vector<1x128xf32>
    %112 = vector.broadcast %111 : vector<1x128xf32> to vector<32x128xf32>
    %113 = arith.mulf %110, %112 : vector<32x128xf32>
    %114 = arith.addf %92, %113 : vector<32x128xf32>
    %c1_i32_26 = arith.constant 1 : i32
    %115 = tpu.dynamic_rotate %104 by %c1_i32_26 dim 0 : vector<32x128xf32>, i32 -> vector<32x128xf32>
    %c9_i32 = arith.constant 9 : i32
    %116 = vector.broadcast %c9_i32 : i32 to vector<32x1xi32>
    %117 = arith.cmpi sge, %22, %116 : vector<32x1xi32>
    %cst_27 = arith.constant 0.000000e+00 : f32
    %118 = vector.shape_cast %117 : vector<32x1xi1> to vector<32x1xi1>
    %119 = vector.broadcast %118 : vector<32x1xi1> to vector<32x128xi1>
    %120 = vector.broadcast %cst_27 : f32 to vector<32x128xf32>
    %121 = arith.select %119, %115, %120 : vector<32x128xi1>, vector<32x128xf32>
    %122 = vector.extract_strided_slice %5 {offsets = [9, 0], sizes = [1, 128], strides = [1, 1]} : vector<16x128xf32> to vector<1x128xf32>
    %123 = vector.broadcast %122 : vector<1x128xf32> to vector<32x128xf32>
    %124 = arith.mulf %121, %123 : vector<32x128xf32>
    %125 = arith.addf %103, %124 : vector<32x128xf32>
    %c1_i32_28 = arith.constant 1 : i32
    %126 = tpu.dynamic_rotate %115 by %c1_i32_28 dim 0 : vector<32x128xf32>, i32 -> vector<32x128xf32>
    %c10_i32 = arith.constant 10 : i32
    %127 = vector.broadcast %c10_i32 : i32 to vector<32x1xi32>
    %128 = arith.cmpi sge, %22, %127 : vector<32x1xi32>
    %cst_29 = arith.constant 0.000000e+00 : f32
    %129 = vector.shape_cast %128 : vector<32x1xi1> to vector<32x1xi1>
    %130 = vector.broadcast %129 : vector<32x1xi1> to vector<32x128xi1>
    %131 = vector.broadcast %cst_29 : f32 to vector<32x128xf32>
    %132 = arith.select %130, %126, %131 : vector<32x128xi1>, vector<32x128xf32>
    %133 = vector.extract_strided_slice %5 {offsets = [10, 0], sizes = [1, 128], strides = [1, 1]} : vector<16x128xf32> to vector<1x128xf32>
    %134 = vector.broadcast %133 : vector<1x128xf32> to vector<32x128xf32>
    %135 = arith.mulf %132, %134 : vector<32x128xf32>
    %136 = arith.addf %114, %135 : vector<32x128xf32>
    %c1_i32_30 = arith.constant 1 : i32
    %137 = tpu.dynamic_rotate %126 by %c1_i32_30 dim 0 : vector<32x128xf32>, i32 -> vector<32x128xf32>
    %c11_i32 = arith.constant 11 : i32
    %138 = vector.broadcast %c11_i32 : i32 to vector<32x1xi32>
    %139 = arith.cmpi sge, %22, %138 : vector<32x1xi32>
    %cst_31 = arith.constant 0.000000e+00 : f32
    %140 = vector.shape_cast %139 : vector<32x1xi1> to vector<32x1xi1>
    %141 = vector.broadcast %140 : vector<32x1xi1> to vector<32x128xi1>
    %142 = vector.broadcast %cst_31 : f32 to vector<32x128xf32>
    %143 = arith.select %141, %137, %142 : vector<32x128xi1>, vector<32x128xf32>
    %144 = vector.extract_strided_slice %5 {offsets = [11, 0], sizes = [1, 128], strides = [1, 1]} : vector<16x128xf32> to vector<1x128xf32>
    %145 = vector.broadcast %144 : vector<1x128xf32> to vector<32x128xf32>
    %146 = arith.mulf %143, %145 : vector<32x128xf32>
    %147 = arith.addf %125, %146 : vector<32x128xf32>
    %c1_i32_32 = arith.constant 1 : i32
    %148 = tpu.dynamic_rotate %137 by %c1_i32_32 dim 0 : vector<32x128xf32>, i32 -> vector<32x128xf32>
    %c12_i32 = arith.constant 12 : i32
    %149 = vector.broadcast %c12_i32 : i32 to vector<32x1xi32>
    %150 = arith.cmpi sge, %22, %149 : vector<32x1xi32>
    %cst_33 = arith.constant 0.000000e+00 : f32
    %151 = vector.shape_cast %150 : vector<32x1xi1> to vector<32x1xi1>
    %152 = vector.broadcast %151 : vector<32x1xi1> to vector<32x128xi1>
    %153 = vector.broadcast %cst_33 : f32 to vector<32x128xf32>
    %154 = arith.select %152, %148, %153 : vector<32x128xi1>, vector<32x128xf32>
    %155 = vector.extract_strided_slice %5 {offsets = [12, 0], sizes = [1, 128], strides = [1, 1]} : vector<16x128xf32> to vector<1x128xf32>
    %156 = vector.broadcast %155 : vector<1x128xf32> to vector<32x128xf32>
    %157 = arith.mulf %154, %156 : vector<32x128xf32>
    %158 = arith.addf %136, %157 : vector<32x128xf32>
    %c1_i32_34 = arith.constant 1 : i32
    %159 = tpu.dynamic_rotate %148 by %c1_i32_34 dim 0 : vector<32x128xf32>, i32 -> vector<32x128xf32>
    %c13_i32 = arith.constant 13 : i32
    %160 = vector.broadcast %c13_i32 : i32 to vector<32x1xi32>
    %161 = arith.cmpi sge, %22, %160 : vector<32x1xi32>
    %cst_35 = arith.constant 0.000000e+00 : f32
    %162 = vector.shape_cast %161 : vector<32x1xi1> to vector<32x1xi1>
    %163 = vector.broadcast %162 : vector<32x1xi1> to vector<32x128xi1>
    %164 = vector.broadcast %cst_35 : f32 to vector<32x128xf32>
    %165 = arith.select %163, %159, %164 : vector<32x128xi1>, vector<32x128xf32>
    %166 = vector.extract_strided_slice %5 {offsets = [13, 0], sizes = [1, 128], strides = [1, 1]} : vector<16x128xf32> to vector<1x128xf32>
    %167 = vector.broadcast %166 : vector<1x128xf32> to vector<32x128xf32>
    %168 = arith.mulf %165, %167 : vector<32x128xf32>
    %169 = arith.addf %147, %168 : vector<32x128xf32>
    %c1_i32_36 = arith.constant 1 : i32
    %170 = tpu.dynamic_rotate %159 by %c1_i32_36 dim 0 : vector<32x128xf32>, i32 -> vector<32x128xf32>
    %c14_i32 = arith.constant 14 : i32
    %171 = vector.broadcast %c14_i32 : i32 to vector<32x1xi32>
    %172 = arith.cmpi sge, %22, %171 : vector<32x1xi32>
    %cst_37 = arith.constant 0.000000e+00 : f32
    %173 = vector.shape_cast %172 : vector<32x1xi1> to vector<32x1xi1>
    %174 = vector.broadcast %173 : vector<32x1xi1> to vector<32x128xi1>
    %175 = vector.broadcast %cst_37 : f32 to vector<32x128xf32>
    %176 = arith.select %174, %170, %175 : vector<32x128xi1>, vector<32x128xf32>
    %177 = vector.extract_strided_slice %5 {offsets = [14, 0], sizes = [1, 128], strides = [1, 1]} : vector<16x128xf32> to vector<1x128xf32>
    %178 = vector.broadcast %177 : vector<1x128xf32> to vector<32x128xf32>
    %179 = arith.mulf %176, %178 : vector<32x128xf32>
    %180 = arith.addf %158, %179 : vector<32x128xf32>
    %c1_i32_38 = arith.constant 1 : i32
    %181 = tpu.dynamic_rotate %170 by %c1_i32_38 dim 0 : vector<32x128xf32>, i32 -> vector<32x128xf32>
    %c15_i32 = arith.constant 15 : i32
    %182 = vector.broadcast %c15_i32 : i32 to vector<32x1xi32>
    %183 = arith.cmpi sge, %22, %182 : vector<32x1xi32>
    %cst_39 = arith.constant 0.000000e+00 : f32
    %184 = vector.shape_cast %183 : vector<32x1xi1> to vector<32x1xi1>
    %185 = vector.broadcast %184 : vector<32x1xi1> to vector<32x128xi1>
    %186 = vector.broadcast %cst_39 : f32 to vector<32x128xf32>
    %187 = arith.select %185, %181, %186 : vector<32x128xi1>, vector<32x128xf32>
    %188 = vector.extract_strided_slice %5 {offsets = [15, 0], sizes = [1, 128], strides = [1, 1]} : vector<16x128xf32> to vector<1x128xf32>
    %189 = vector.broadcast %188 : vector<1x128xf32> to vector<32x128xf32>
    %190 = arith.mulf %187, %189 : vector<32x128xf32>
    %191 = arith.addf %169, %190 : vector<32x128xf32>
    %192 = arith.addf %180, %191 : vector<32x128xf32>
    %c0_40 = arith.constant 0 : index
    %c0_41 = arith.constant 0 : index
    %c0_42 = arith.constant 0 : index
    %193 = vector.load %arg7[%c0_40, %c0_41, %c0_42] : memref<1x1x128xf32, #tpu.memory_space<vmem>>, vector<1x1x128xf32>
    %194 = vector.shape_cast %193 : vector<1x1x128xf32> to vector<1x128xf32>
    %195 = vector.broadcast %194 : vector<1x128xf32> to vector<32x128xf32>
    %196 = arith.mulf %3, %195 : vector<32x128xf32>
    %197 = arith.addf %192, %196 : vector<32x128xf32>
    %198 = arith.mulf %197, %197 : vector<32x128xf32>
    %199 = arith.mulf %197, %198 : vector<32x128xf32>
    %cst_43 = arith.constant 4.471500e-02 : f32
    %200 = vector.broadcast %cst_43 : f32 to vector<32x128xf32>
    %201 = arith.mulf %200, %199 : vector<32x128xf32>
    %202 = arith.addf %197, %201 : vector<32x128xf32>
    %cst_44 = arith.constant 0.797884583 : f32
    %203 = vector.broadcast %cst_44 : f32 to vector<32x128xf32>
    %204 = arith.mulf %203, %202 : vector<32x128xf32>
    %205 = math.tanh %204 : vector<32x128xf32>
    %cst_45 = arith.constant 1.000000e+00 : f32
    %206 = vector.broadcast %cst_45 : f32 to vector<32x128xf32>
    %207 = arith.addf %206, %205 : vector<32x128xf32>
    %cst_46 = arith.constant 5.000000e-01 : f32
    %208 = vector.broadcast %cst_46 : f32 to vector<32x128xf32>
    %209 = arith.mulf %208, %207 : vector<32x128xf32>
    %210 = arith.mulf %197, %209 : vector<32x128xf32>
    %211 = arith.truncf %210 : vector<32x128xf32> to vector<32x128xbf16>
    %c0_47 = arith.constant 0 : index
    %c0_48 = arith.constant 0 : index
    %c0_49 = arith.constant 0 : index
    %212 = vector.load %arg8[%c0_47, %c0_48, %c0_49] : memref<1x128x256xbf16, #tpu.memory_space<vmem>>, vector<1x128x256xbf16>
    %213 = vector.shape_cast %212 : vector<1x128x256xbf16> to vector<128x256xbf16>
    %cst_50 = arith.constant dense<0.000000e+00> : vector<32x256xf32>
    %214 = tpu.matmul %211, %213, %cst_50 {dimension_numbers = #tpu.dot_dimension_numbers<[1], [0], [0], [1], [0, 0, 1, 1], [], []>} : vector<32x128xbf16>, vector<128x256xbf16>, vector<32x256xf32> -> vector<32x256xf32>
    %c0_51 = arith.constant 0 : index
    %c0_52 = arith.constant 0 : index
    %c0_53 = arith.constant 0 : index
    %215 = vector.load %arg9[%c0_51, %c0_52, %c0_53] : memref<1x1x256xf32, #tpu.memory_space<vmem>>, vector<1x1x256xf32>
    %216 = vector.shape_cast %215 : vector<1x1x256xf32> to vector<1x256xf32>
    %217 = vector.broadcast %216 : vector<1x256xf32> to vector<32x256xf32>
    %218 = arith.addf %214, %217 : vector<32x256xf32>
    %219 = vector.extract_strided_slice %218 {offsets = [0, 0], sizes = [32, 128], strides = [1, 1]} : vector<32x256xf32> to vector<32x128xf32>
    %220 = vector.extract_strided_slice %218 {offsets = [0, 128], sizes = [32, 128], strides = [1, 1]} : vector<32x256xf32> to vector<32x128xf32>
    %221 = arith.negf %220 : vector<32x128xf32>
    %222 = math.exp %221 : vector<32x128xf32>
    %cst_54 = arith.constant 1.000000e+00 : f32
    %223 = vector.broadcast %cst_54 : f32 to vector<32x128xf32>
    %224 = arith.addf %223, %222 : vector<32x128xf32>
    %225 = arith.divf %223, %224 : vector<32x128xf32>
    %226 = arith.mulf %219, %225 : vector<32x128xf32>
    %227 = arith.addf %226, %3 : vector<32x128xf32>
    %cst_55 = arith.constant dense<0.000000e+00> : vector<32xf32>
    %228 = vector.multi_reduction <add>, %227, %cst_55 [1] : vector<32x128xf32> to vector<32xf32>
    %229 = vector.shape_cast %228 : vector<32xf32> to vector<32x1xf32>
    %cst_56 = arith.constant 3.125000e-02 : f32
    %230 = vector.broadcast %cst_56 : f32 to vector<32x1xf32>
    %231 = arith.mulf %229, %230 : vector<32x1xf32>
    %232 = arith.mulf %227, %227 : vector<32x128xf32>
    %cst_57 = arith.constant dense<0.000000e+00> : vector<32xf32>
    %233 = vector.multi_reduction <add>, %232, %cst_57 [1] : vector<32x128xf32> to vector<32xf32>
    %234 = vector.shape_cast %233 : vector<32xf32> to vector<32x1xf32>
    %cst_58 = arith.constant 3.125000e-02 : f32
    %235 = vector.broadcast %cst_58 : f32 to vector<32x1xf32>
    %236 = arith.mulf %234, %235 : vector<32x1xf32>
    %237 = arith.mulf %231, %231 : vector<32x1xf32>
    %238 = arith.subf %236, %237 : vector<32x1xf32>
    %239 = vector.broadcast %231 : vector<32x1xf32> to vector<32x128xf32>
    %240 = arith.subf %227, %239 : vector<32x128xf32>
    %cst_59 = arith.constant 9.99999974E-6 : f32
    %241 = vector.broadcast %cst_59 : f32 to vector<32x1xf32>
    %242 = arith.addf %238, %241 : vector<32x1xf32>
    %243 = math.rsqrt %242 : vector<32x1xf32>
    %244 = vector.broadcast %243 : vector<32x1xf32> to vector<32x128xf32>
    %245 = arith.mulf %240, %244 : vector<32x128xf32>
    %c0_60 = arith.constant 0 : index
    %c0_61 = arith.constant 0 : index
    %c0_62 = arith.constant 0 : index
    %246 = vector.load %arg10[%c0_60, %c0_61, %c0_62] : memref<1x1x128xf32, #tpu.memory_space<vmem>>, vector<1x1x128xf32>
    %247 = vector.shape_cast %246 : vector<1x1x128xf32> to vector<1x128xf32>
    %248 = vector.broadcast %247 : vector<1x128xf32> to vector<32x128xf32>
    %249 = arith.mulf %245, %248 : vector<32x128xf32>
    %c0_63 = arith.constant 0 : index
    %c0_64 = arith.constant 0 : index
    %c0_65 = arith.constant 0 : index
    %250 = vector.load %arg11[%c0_63, %c0_64, %c0_65] : memref<1x1x128xf32, #tpu.memory_space<vmem>>, vector<1x1x128xf32>
    %251 = vector.shape_cast %250 : vector<1x1x128xf32> to vector<1x128xf32>
    %252 = vector.broadcast %251 : vector<1x128xf32> to vector<32x128xf32>
    %253 = arith.addf %249, %252 : vector<32x128xf32>
    %c0_66 = arith.constant 0 : index
    %c0_67 = arith.constant 0 : index
    %254 = vector.load %arg15[%c0_66, %c0_67] : memref<32x128xf32, #tpu.memory_space<vmem>>, vector<32x128xf32>
    tpu.vector_store %arg15[%c0_66, %c0_67], %253 {strides = array<i32>} : memref<32x128xf32, #tpu.memory_space<vmem>>, vector<32x128xf32>,
    %c1_i32_68 = arith.constant 1 : i32
    %255 = arith.cmpi eq, %arg1, %c1_i32_68 : i32
    %256 = arith.extui %255 : i1 to i32
    %c0_i32_69 = arith.constant 0 : i32
    %257 = arith.cmpi ne, %256, %c0_i32_69 : i32
    scf.if %257 {
      %c0_70 = arith.constant 0 : index
      %c0_71 = arith.constant 0 : index
      %258 = vector.load %arg3[%c0_70, %c0_71] : memref<2x32xf32, #tpu.memory_space<vmem>>, vector<2x32xf32>
      %cst_72 = arith.constant dense<0.000000e+00> : vector<2x128xf32>
      %259 = tpu.matmul %258, %253, %cst_72 {dimension_numbers = #tpu.dot_dimension_numbers<[1], [0], [0], [1], [0, 0, 1, 1], [], []>} : vector<2x32xf32>, vector<32x128xf32>, vector<2x128xf32> -> vector<2x128xf32>
      %260 = arith.truncf %259 : vector<2x128xf32> to vector<2x128xbf16>
      %c0_73 = arith.constant 0 : index
      %c0_74 = arith.constant 0 : index
      %261 = vector.load %arg12[%c0_73, %c0_74] : memref<128x128xbf16, #tpu.memory_space<vmem>>, vector<128x128xbf16>
      %cst_75 = arith.constant dense<0.000000e+00> : vector<2x128xf32>
      %262 = tpu.matmul %260, %261, %cst_75 {dimension_numbers = #tpu.dot_dimension_numbers<[1], [0], [0], [1], [0, 0, 1, 1], [], []>} : vector<2x128xbf16>, vector<128x128xbf16>, vector<2x128xf32> -> vector<2x128xf32>
      %c0_76 = arith.constant 0 : index
      %c0_77 = arith.constant 0 : index
      %263 = vector.load %arg13[%c0_76, %c0_77] : memref<1x128xf32, #tpu.memory_space<vmem>>, vector<1x128xf32>
      %264 = vector.broadcast %263 : vector<1x128xf32> to vector<2x128xf32>
      %265 = arith.addf %262, %264 : vector<2x128xf32>
      %c0_78 = arith.constant 0 : index
      %c0_79 = arith.constant 0 : index
      %266 = vector.load %arg14[%c0_78, %c0_79] : memref<2x128xf32, #tpu.memory_space<vmem>>, vector<2x128xf32>
      tpu.vector_store %arg14[%c0_78, %c0_79], %265 {strides = array<i32>} : memref<2x128xf32, #tpu.memory_space<vmem>>, vector<2x128xf32>,
    } else {
    }
    return
  }
  func.func @transform_0(%arg0: i32, %arg1: i32) -> (i32, i32) {
    %c0_i32 = arith.constant 0 : i32
    %c0_i32_0 = arith.constant 0 : i32
    return %arg0, %c0_i32 : i32, i32
  }
  func.func @transform_1(%arg0: i32, %arg1: i32) -> (i32, i32) {
    %c0_i32 = arith.constant 0 : i32
    %c0_i32_0 = arith.constant 0 : i32
    %c0_i32_1 = arith.constant 0 : i32
    return %c0_i32, %c0_i32_0 : i32, i32
  }
  func.func @transform_2(%arg0: i32, %arg1: i32) -> (i32, i32) {
    %c0_i32 = arith.constant 0 : i32
    %c0_i32_0 = arith.constant 0 : i32
    %c0_i32_1 = arith.constant 0 : i32
    return %c0_i32, %c0_i32_0 : i32, i32
  }
  func.func @transform_3(%arg0: i32, %arg1: i32) -> (i32, i32) {
    %c0_i32 = arith.constant 0 : i32
    %c0_i32_0 = arith.constant 0 : i32
    %c0_i32_1 = arith.constant 0 : i32
    return %c0_i32, %c0_i32_0 : i32, i32
  }
  func.func @transform_4(%arg0: i32, %arg1: i32) -> (i32, i32, i32) {
    %c0_i32 = arith.constant 0 : i32
    %c0_i32_0 = arith.constant 0 : i32
    %c0_i32_1 = arith.constant 0 : i32
    return %arg1, %c0_i32, %c0_i32_0 : i32, i32, i32
  }
  func.func @transform_5(%arg0: i32, %arg1: i32) -> (i32, i32, i32) {
    %c0_i32 = arith.constant 0 : i32
    %c0_i32_0 = arith.constant 0 : i32
    %c0_i32_1 = arith.constant 0 : i32
    return %arg1, %c0_i32, %c0_i32_0 : i32, i32, i32
  }
  func.func @transform_6(%arg0: i32, %arg1: i32) -> (i32, i32, i32) {
    %c0_i32 = arith.constant 0 : i32
    %c0_i32_0 = arith.constant 0 : i32
    %c0_i32_1 = arith.constant 0 : i32
    return %arg1, %c0_i32, %c0_i32_0 : i32, i32, i32
  }
  func.func @transform_7(%arg0: i32, %arg1: i32) -> (i32, i32, i32) {
    %c0_i32 = arith.constant 0 : i32
    %c0_i32_0 = arith.constant 0 : i32
    %c0_i32_1 = arith.constant 0 : i32
    return %arg1, %c0_i32, %c0_i32_0 : i32, i32, i32
  }
  func.func @transform_8(%arg0: i32, %arg1: i32) -> (i32, i32, i32) {
    %c0_i32 = arith.constant 0 : i32
    %c0_i32_0 = arith.constant 0 : i32
    %c0_i32_1 = arith.constant 0 : i32
    return %arg1, %c0_i32, %c0_i32_0 : i32, i32, i32
  }
  func.func @transform_9(%arg0: i32, %arg1: i32) -> (i32, i32, i32) {
    %c0_i32 = arith.constant 0 : i32
    %c0_i32_0 = arith.constant 0 : i32
    %c0_i32_1 = arith.constant 0 : i32
    return %arg1, %c0_i32, %c0_i32_0 : i32, i32, i32
  }
  func.func @transform_10(%arg0: i32, %arg1: i32) -> (i32, i32) {
    %c0_i32 = arith.constant 0 : i32
    %c0_i32_0 = arith.constant 0 : i32
    %c0_i32_1 = arith.constant 0 : i32
    return %c0_i32, %c0_i32_0 : i32, i32
  }
  func.func @transform_11(%arg0: i32, %arg1: i32) -> (i32, i32) {
    %c0_i32 = arith.constant 0 : i32
    %c0_i32_0 = arith.constant 0 : i32
    %c0_i32_1 = arith.constant 0 : i32
    return %c0_i32, %c0_i32_0 : i32, i32
  }
  func.func @transform_12(%arg0: i32, %arg1: i32) -> (i32, i32) {
    %c0_i32 = arith.constant 0 : i32
    %c0_i32_0 = arith.constant 0 : i32
    return %arg0, %c0_i32 : i32, i32
  }
}

</mosaic_0001>

<llo_original>
// kernel: s4_model_forward.1
$region0: #{s4_model_forward.1}
  #allocation0 [shape = 'u32[]', space=smem, size = 0x4, offset = 0x4, fixed_abs, tag = 'smem constant byte address 0x4 - core index']
  #allocation1 [shape = 'u32[72,128]{1,0:T(1,128)}', space=vmem, size = 0x9000, scoped, tag = 'internal scratch']
  #allocation2 [shape = 'f32[32,128]{1,0:T(8,128)}', space=vmem, size = 0x4000, scoped, tag = 'scratch operand']
  %s0 = inlined_call_operand.vmem [shape: f32[32,2], index: 0, kind: input, shape index: {}]
  %s1 = inlined_call_operand.vmem [shape: f32[2,32], index: 1, kind: input, shape index: {}]
  %s2 = inlined_call_operand.vmem [shape: f32[2,128], index: 2, kind: input, shape index: {}]
  %s3 = inlined_call_operand.vmem [shape: f32[1,128], index: 3, kind: input, shape index: {}]
  %s4 = inlined_call_operand.vmem [shape: f32[2,16,128], index: 4, kind: input, shape index: {}]
  %s5 = inlined_call_operand.vmem [shape: f32[2,1,128], index: 5, kind: input, shape index: {}]
  %s6 = inlined_call_operand.vmem [shape: bf16[2,128,256], index: 6, kind: input, shape index: {}]
  %s7 = inlined_call_operand.vmem [shape: f32[2,1,256], index: 7, kind: input, shape index: {}]
  %s8 = inlined_call_operand.vmem [shape: f32[2,1,128], index: 8, kind: input, shape index: {}]
  %s9 = inlined_call_operand.vmem [shape: f32[2,1,128], index: 9, kind: input, shape index: {}]
  %s10 = inlined_call_operand.vmem [shape: bf16[128,128], index: 10, kind: input, shape index: {}]
  %s11 = inlined_call_operand.vmem [shape: f32[1,128], index: 11, kind: input, shape index: {}]
  %s12 = inlined_call_operand.hbm [shape: f32[2,128], index: 12, kind: output, shape index: {}]
  %s13 = sld [smem:[#allocation0]]
  $region89: #{s4_model_forward.1} parent=0
    _
  %s15 = ssub.s32 1, %s13
  %s16 = scalar_select 0, %s15, %s13
  $region1: #{s4_model_forward.1} parent=0
    #allocation3 [shape = 'u8[1024]{0}', space=vmem, size = 0x400, scoped, tag = 'output window, operand 0, single buffered']
    #allocation4 [shape = 's32[2]{0}', space=sflag, size = 0x8, scoped, tag = 'scoped memory for s4_model_forward.1']
    %17 = vsyncpa [#allocation4], 0
    loop: start=0, step=1, limit=4
    $region2: #{s4_model_forward.1} parent=1 // loop_pre_header
      _
    $region3: #{s4_model_forward.1} parent=1 // loop_header
      %s19 = sphi 0, %s23
      %p20 = scmp.ge.s32.totalorder %s19, 4
      %s26 = sphi 0, %s38
      %s27 = sphi 0, %s34
      %s28 = sphi 0, %s26
      %s29 = sphi 0, %s27
      %s30 = sphi 0, %s28
      %s31 = sphi 0, %s29
      %s41 = sphi 0, %s43
      %s44 = sphi 0, %s41
      %s45 = sphi 0, %s44
      %s61 = sphi 0, %s45
      %s65 = sphi 0, %s65
      %s67 = sphi 0, %s65
      %s68 = sphi 0, %s67
      %s82 = sphi 0, %s68
      %s86 = sphi 0, %s86
      %s88 = sphi 0, %s86
      %s89 = sphi 0, %s88
      %s103 = sphi 0, %s89
      %s107 = sphi 0, %s107
      %s109 = sphi 0, %s107
      %s110 = sphi 0, %s109
      %s124 = sphi 0, %s110
      %s130 = sphi 0, %s132
      %s133 = sphi 0, %s130
      %s134 = sphi 0, %s133
      %s150 = sphi 0, %s134
      %s156 = sphi 0, %s158
      %s159 = sphi 0, %s156
      %s160 = sphi 0, %s159
      %s176 = sphi 0, %s160
      %s182 = sphi 0, %s184
      %s185 = sphi 0, %s182
      %s186 = sphi 0, %s185
      %s202 = sphi 0, %s186
      %s208 = sphi 0, %s210
      %s211 = sphi 0, %s208
      %s212 = sphi 0, %s211
      %s228 = sphi 0, %s212
      %s234 = sphi 0, %s236
      %s237 = sphi 0, %s234
      %s238 = sphi 0, %s237
      %s254 = sphi 0, %s238
      %s260 = sphi 0, %s262
      %s263 = sphi 0, %s260
      %s264 = sphi 0, %s263
      %s280 = sphi 0, %s264
      %s284 = sphi 0, %s284
      %s286 = sphi 0, %s284
      %s287 = sphi 0, %s286
      %s301 = sphi 0, %s287
      %s305 = sphi 0, %s305
      %s307 = sphi 0, %s305
      %s308 = sphi 0, %s307
      %s322 = sphi 0, %s308
      %s328 = sphi 0, %s330
      %s331 = sphi 0, %s328
      %s332 = sphi 0, %s331
      %s348 = sphi 0, %s332
    $region4: #{s4_model_forward.1} parent=1 // loop_header_branch
      %22 = sbr.rel (%p20) target = $region8
    $region5: #{s4_model_forward.1} parent=1 // loop_body
      %s24 = ssub.s32 %s19, 1
      %s25 = ssub.s32 %s19, 2
      %s32 = sadd.s32 1, %s27
      %p33 = scmp.ge.s32.totalorder %s32, 2
      %s34 = scalar_select %p33, 0, %s32
      %s35 = sadd.s32 1, %s26
      %s36 = scalar_select %p33, %s35, %s26
      %p37 = scmp.ge.s32.totalorder %s36, 1
      %s38 = scalar_select %p37, 0, %s36
      %s39 = ssub.s32 %s26, %s38
      %p40 = scmp.eq.s32.totalorder %s39, 0
      %s42 = sadd.s32 %s41, 1
      %s43 = scalar_select %p40, %s41, %s42
      %p46 = pneg %p40
      %p47 = scmp.eq.s32.totalorder %s19, 1
      %p48 = por %p46, %p47
      %p49 = scmp.ne.s32.totalorder %s41, %s44
      %p50 = scmp.eq.s32.totalorder %s19, 0
      %p51 = por %p49, %p50
      %p52 = scmp.ne.s32.totalorder %s41, %s44
      %p53 = scmp.eq.s32.totalorder %s24, 1
      %p54 = por %p52, %p53
      %p55 = scmp.ne.s32.totalorder %s44, %s45
      %p56 = scmp.eq.s32.totalorder %s24, 0
      %p57 = por %p55, %p56
      %p58 = scmp.ne.s32.totalorder %s44, %s45
      %p59 = scmp.eq.s32.totalorder %s25, 1
      %p60 = por %p58, %p59
      %p62 = scmp.ne.s32.totalorder %s45, %s61
      %p63 = scmp.eq.s32.totalorder %s25, 0
      %p64 = por %p62, %p63
      %s66 = sadd.s32 %s65, 1
      %p69 = scmp.eq.s32.totalorder %s19, 1
      %p70 = scmp.ne.s32.totalorder %s65, %s67
      %p71 = scmp.eq.s32.totalorder %s19, 0
      %p72 = por %p70, %p71
      %p73 = scmp.ne.s32.totalorder %s65, %s67
      %p74 = scmp.eq.s32.totalorder %s24, 1
      %p75 = por %p73, %p74
      %p76 = scmp.ne.s32.totalorder %s67, %s68
      %p77 = scmp.eq.s32.totalorder %s24, 0
      %p78 = por %p76, %p77
      %p79 = scmp.ne.s32.totalorder %s67, %s68
      %p80 = scmp.eq.s32.totalorder %s25, 1
      %p81 = por %p79, %p80
      %p83 = scmp.ne.s32.totalorder %s68, %s82
      %p84 = scmp.eq.s32.totalorder %s25, 0
      %p85 = por %p83, %p84
      %s87 = sadd.s32 %s86, 1
      %p90 = scmp.eq.s32.totalorder %s19, 1
      %p91 = scmp.ne.s32.totalorder %s86, %s88
      %p92 = scmp.eq.s32.totalorder %s19, 0
      %p93 = por %p91, %p92
      %p94 = scmp.ne.s32.totalorder %s86, %s88
      %p95 = scmp.eq.s32.totalorder %s24, 1
      %p96 = por %p94, %p95
      %p97 = scmp.ne.s32.totalorder %s88, %s89
      %p98 = scmp.eq.s32.totalorder %s24, 0
      %p99 = por %p97, %p98
      %p100 = scmp.ne.s32.totalorder %s88, %s89
      %p101 = scmp.eq.s32.totalorder %s25, 1
      %p102 = por %p100, %p101
      %p104 = scmp.ne.s32.totalorder %s89, %s103
      %p105 = scmp.eq.s32.totalorder %s25, 0
      %p106 = por %p104, %p105
      %s108 = sadd.s32 %s107, 1
      %p111 = scmp.eq.s32.totalorder %s19, 1
      %p112 = scmp.ne.s32.totalorder %s107, %s109
      %p113 = scmp.eq.s32.totalorder %s19, 0
      %p114 = por %p112, %p113
      %p115 = scmp.ne.s32.totalorder %s107, %s109
      %p116 = scmp.eq.s32.totalorder %s24, 1
      %p117 = por %p115, %p116
      %p118 = scmp.ne.s32.totalorder %s109, %s110
      %p119 = scmp.eq.s32.totalorder %s24, 0
      %p120 = por %p118, %p119
      %p121 = scmp.ne.s32.totalorder %s109, %s110
      %p122 = scmp.eq.s32.totalorder %s25, 1
      %p123 = por %p121, %p122
      %p125 = scmp.ne.s32.totalorder %s110, %s124
      %p126 = scmp.eq.s32.totalorder %s25, 0
      %p127 = por %p125, %p126
      %s128 = ssub.s32 %s27, %s34
      %p129 = scmp.eq.s32.totalorder %s128, 0
      %s131 = sadd.s32 %s130, 1
      %s132 = scalar_select %p129, %s130, %s131
      %p135 = pneg %p129
      %p136 = scmp.eq.s32.totalorder %s19, 1
      %p137 = por %p135, %p136
      %p138 = scmp.ne.s32.totalorder %s130, %s133
      %p139 = scmp.eq.s32.totalorder %s19, 0
      %p140 = por %p138, %p139
      %p141 = scmp.ne.s32.totalorder %s130, %s133
      %p142 = scmp.eq.s32.totalorder %s24, 1
      %p143 = por %p141, %p142
      %p144 = scmp.ne.s32.totalorder %s133, %s134
      %p145 = scmp.eq.s32.totalorder %s24, 0
      %p146 = por %p144, %p145
      %p147 = scmp.ne.s32.totalorder %s133, %s134
      %p148 = scmp.eq.s32.totalorder %s25, 1
      %p149 = por %p147, %p148
      %p151 = scmp.ne.s32.totalorder %s134, %s150
      %p152 = scmp.eq.s32.totalorder %s25, 0
      %p153 = por %p151, %p152
      %s154 = ssub.s32 %s27, %s34
      %p155 = scmp.eq.s32.totalorder %s154, 0
      %s157 = sadd.s32 %s156, 1
      %s158 = scalar_select %p155, %s156, %s157
      %p161 = pneg %p155
      %p162 = scmp.eq.s32.totalorder %s19, 1
      %p163 = por %p161, %p162
      %p164 = scmp.ne.s32.totalorder %s156, %s159
      %p165 = scmp.eq.s32.totalorder %s19, 0
      %p166 = por %p164, %p165
      %p167 = scmp.ne.s32.totalorder %s156, %s159
      %p168 = scmp.eq.s32.totalorder %s24, 1
      %p169 = por %p167, %p168
      %p170 = scmp.ne.s32.totalorder %s159, %s160
      %p171 = scmp.eq.s32.totalorder %s24, 0
      %p172 = por %p170, %p171
      %p173 = scmp.ne.s32.totalorder %s159, %s160
      %p174 = scmp.eq.s32.totalorder %s25, 1
      %p175 = por %p173, %p174
      %p177 = scmp.ne.s32.totalorder %s160, %s176
      %p178 = scmp.eq.s32.totalorder %s25, 0
      %p179 = por %p177, %p178
      %s180 = ssub.s32 %s27, %s34
      %p181 = scmp.eq.s32.totalorder %s180, 0
      %s183 = sadd.s32 %s182, 1
      %s184 = scalar_select %p181, %s182, %s183
      %p187 = pneg %p181
      %p188 = scmp.eq.s32.totalorder %s19, 1
      %p189 = por %p187, %p188
      %p190 = scmp.ne.s32.totalorder %s182, %s185
      %p191 = scmp.eq.s32.totalorder %s19, 0
      %p192 = por %p190, %p191
      %p193 = scmp.ne.s32.totalorder %s182, %s185
      %p194 = scmp.eq.s32.totalorder %s24, 1
      %p195 = por %p193, %p194
      %p196 = scmp.ne.s32.totalorder %s185, %s186
      %p197 = scmp.eq.s32.totalorder %s24, 0
      %p198 = por %p196, %p197
      %p199 = scmp.ne.s32.totalorder %s185, %s186
      %p200 = scmp.eq.s32.totalorder %s25, 1
      %p201 = por %p199, %p200
      %p203 = scmp.ne.s32.totalorder %s186, %s202
      %p204 = scmp.eq.s32.totalorder %s25, 0
      %p205 = por %p203, %p204
      %s206 = ssub.s32 %s27, %s34
      %p207 = scmp.eq.s32.totalorder %s206, 0
      %s209 = sadd.s32 %s208, 1
      %s210 = scalar_select %p207, %s208, %s209
      %p213 = pneg %p207
      %p214 = scmp.eq.s32.totalorder %s19, 1
      %p215 = por %p213, %p214
      %p216 = scmp.ne.s32.totalorder %s208, %s211
      %p217 = scmp.eq.s32.totalorder %s19, 0
      %p218 = por %p216, %p217
      %p219 = scmp.ne.s32.totalorder %s208, %s211
      %p220 = scmp.eq.s32.totalorder %s24, 1
      %p221 = por %p219, %p220
      %p222 = scmp.ne.s32.totalorder %s211, %s212
      %p223 = scmp.eq.s32.totalorder %s24, 0
      %p224 = por %p222, %p223
      %p225 = scmp.ne.s32.totalorder %s211, %s212
      %p226 = scmp.eq.s32.totalorder %s25, 1
      %p227 = por %p225, %p226
      %p229 = scmp.ne.s32.totalorder %s212, %s228
      %p230 = scmp.eq.s32.totalorder %s25, 0
      %p231 = por %p229, %p230
      %s232 = ssub.s32 %s27, %s34
      %p233 = scmp.eq.s32.totalorder %s232, 0
      %s235 = sadd.s32 %s234, 1
      %s236 = scalar_select %p233, %s234, %s235
      %p239 = pneg %p233
      %p240 = scmp.eq.s32.totalorder %s19, 1
      %p241 = por %p239, %p240
      %p242 = scmp.ne.s32.totalorder %s234, %s237
      %p243 = scmp.eq.s32.totalorder %s19, 0
      %p244 = por %p242, %p243
      %p245 = scmp.ne.s32.totalorder %s234, %s237
      %p246 = scmp.eq.s32.totalorder %s24, 1
      %p247 = por %p245, %p246
      %p248 = scmp.ne.s32.totalorder %s237, %s238
      %p249 = scmp.eq.s32.totalorder %s24, 0
      %p250 = por %p248, %p249
      %p251 = scmp.ne.s32.totalorder %s237, %s238
      %p252 = scmp.eq.s32.totalorder %s25, 1
      %p253 = por %p251, %p252
      %p255 = scmp.ne.s32.totalorder %s238, %s254
      %p256 = scmp.eq.s32.totalorder %s25, 0
      %p257 = por %p255, %p256
      %s258 = ssub.s32 %s27, %s34
      %p259 = scmp.eq.s32.totalorder %s258, 0
      %s261 = sadd.s32 %s260, 1
      %s262 = scalar_select %p259, %s260, %s261
      %p265 = pneg %p259
      %p266 = scmp.eq.s32.totalorder %s19, 1
      %p267 = por %p265, %p266
      %p268 = scmp.ne.s32.totalorder %s260, %s263
      %p269 = scmp.eq.s32.totalorder %s19, 0
      %p270 = por %p268, %p269
      %p271 = scmp.ne.s32.totalorder %s260, %s263
      %p272 = scmp.eq.s32.totalorder %s24, 1
      %p273 = por %p271, %p272
      %p274 = scmp.ne.s32.totalorder %s263, %s264
      %p275 = scmp.eq.s32.totalorder %s24, 0
      %p276 = por %p274, %p275
      %p277 = scmp.ne.s32.totalorder %s263, %s264
      %p278 = scmp.eq.s32.totalorder %s25, 1
      %p279 = por %p277, %p278
      %p281 = scmp.ne.s32.totalorder %s264, %s280
      %p282 = scmp.eq.s32.totalorder %s25, 0
      %p283 = por %p281, %p282
      %s285 = sadd.s32 %s284, 1
      %p288 = scmp.eq.s32.totalorder %s19, 1
      %p289 = scmp.ne.s32.totalorder %s284, %s286
      %p290 = scmp.eq.s32.totalorder %s19, 0
      %p291 = por %p289, %p290
      %p292 = scmp.ne.s32.totalorder %s284, %s286
      %p293 = scmp.eq.s32.totalorder %s24, 1
      %p294 = por %p292, %p293
      %p295 = scmp.ne.s32.totalorder %s286, %s287
      %p296 = scmp.eq.s32.totalorder %s24, 0
      %p297 = por %p295, %p296
      %p298 = scmp.ne.s32.totalorder %s286, %s287
      %p299 = scmp.eq.s32.totalorder %s25, 1
      %p300 = por %p298, %p299
      %p302 = scmp.ne.s32.totalorder %s287, %s301
      %p303 = scmp.eq.s32.totalorder %s25, 0
      %p304 = por %p302, %p303
      %s306 = sadd.s32 %s305, 1
      %p309 = scmp.eq.s32.totalorder %s19, 1
      %p310 = scmp.ne.s32.totalorder %s305, %s307
      %p311 = scmp.eq.s32.totalorder %s19, 0
      %p312 = por %p310, %p311
      %p313 = scmp.ne.s32.totalorder %s305, %s307
      %p314 = scmp.eq.s32.totalorder %s24, 1
      %p315 = por %p313, %p314
      %p316 = scmp.ne.s32.totalorder %s307, %s308
      %p317 = scmp.eq.s32.totalorder %s24, 0
      %p318 = por %p316, %p317
      %p319 = scmp.ne.s32.totalorder %s307, %s308
      %p320 = scmp.eq.s32.totalorder %s25, 1
      %p321 = por %p319, %p320
      %p323 = scmp.ne.s32.totalorder %s308, %s322
      %p324 = scmp.eq.s32.totalorder %s25, 0
      %p325 = por %p323, %p324
      %s326 = ssub.s32 %s26, %s38
      %p327 = scmp.eq.s32.totalorder %s326, 0
      %s329 = sadd.s32 %s328, 1
      %s330 = scalar_select %p327, %s328, %s329
      %p333 = pneg %p327
      %p334 = scmp.eq.s32.totalorder %s19, 1
      %p335 = por %p333, %p334
      %p336 = scmp.ne.s32.totalorder %s328, %s331
      %p337 = scmp.eq.s32.totalorder %s19, 0
      %p338 = por %p336, %p337
      %p339 = scmp.ne.s32.totalorder %s328, %s331
      %p340 = scmp.eq.s32.totalorder %s24, 1
      %p341 = por %p339, %p340
      %p342 = scmp.ne.s32.totalorder %s331, %s332
      %p343 = scmp.eq.s32.totalorder %s24, 0
      %p344 = por %p342, %p343
      %p345 = scmp.ne.s32.totalorder %s331, %s332
      %p346 = scmp.eq.s32.totalorder %s25, 1
      %p347 = por %p345, %p346
      %p349 = scmp.ne.s32.totalorder %s332, %s348
      %p350 = scmp.eq.s32.totalorder %s25, 0
      %p351 = por %p349, %p350
      %p352 = scmp.le.s32.totalorder 1, %s19
      %p353 = scmp.lt.s32.totalorder %s19, 3
      %p354 = pnand %p352, %p353
      %p355 = pneg %p354
      // Predicated region
      $region9: #{s4_model_forward.1} parent=5 // pred_check
        _
      $region10: #{s4_model_forward.1} parent=5 // pred_check_branch
        %357 = sbr.rel (%p354) target = $region12
      $region11: #{s4_model_forward.1} parent=5 // pred_region
        %s358 = ssub.s32 %s19, 1
        // Predicated region
        $region13: #{s4_model_forward.1} parent=11 // pred_check
          %p359 = pneg %p57
        $region14: #{s4_model_forward.1} parent=11 // pred_check_branch
          %361 = sbr.rel (%p359) target = $region16
        $region15: #{s4_model_forward.1} parent=11 // pred_region
          %s362 = smul.u32 4, %s28
          %p363 = scmp.lt.s32.totalorder %s362, 3
          %s364 = scalar_select %p363, %s362, 3
          %s365 = smul.addr %s364, 8
          %s366 = scalar_lea.vmem %s0, %s365
          %s367 = smul.u32 4, %s28
        $region16: #{s4_model_forward.1} parent=11 // pred_fallthru
          _
        // Predicated region
        $region17: #{s4_model_forward.1} parent=11 // pred_check
          %p368 = pneg %p78
        $region18: #{s4_model_forward.1} parent=11 // pred_check_branch
          %370 = sbr.rel (%p368) target = $region20
        $region19: #{s4_model_forward.1} parent=11 // pred_region
          _
        $region20: #{s4_model_forward.1} parent=11 // pred_fallthru
          _
        // Predicated region
        $region21: #{s4_model_forward.1} parent=11 // pred_check
          %p371 = pneg %p99
        $region22: #{s4_model_forward.1} parent=11 // pred_check_branch
          %373 = sbr.rel (%p371) target = $region24
        $region23: #{s4_model_forward.1} parent=11 // pred_region
          _
        $region24: #{s4_model_forward.1} parent=11 // pred_fallthru
          _
        // Predicated region
        $region25: #{s4_model_forward.1} parent=11 // pred_check
          %p374 = pneg %p120
        $region26: #{s4_model_forward.1} parent=11 // pred_check_branch
          %376 = sbr.rel (%p374) target = $region28
        $region27: #{s4_model_forward.1} parent=11 // pred_region
          _
        $region28: #{s4_model_forward.1} parent=11 // pred_fallthru
          _
        // Predicated region
        $region29: #{s4_model_forward.1} parent=11 // pred_check
          %p377 = pneg %p297
        $region30: #{s4_model_forward.1} parent=11 // pred_check_branch
          %379 = sbr.rel (%p377) target = $region32
        $region31: #{s4_model_forward.1} parent=11 // pred_region
          _
        $region32: #{s4_model_forward.1} parent=11 // pred_fallthru
          _
        // Predicated region
        $region33: #{s4_model_forward.1} parent=11 // pred_check
          %p380 = pneg %p318
        $region34: #{s4_model_forward.1} parent=11 // pred_check_branch
          %382 = sbr.rel (%p380) target = $region36
        $region35: #{s4_model_forward.1} parent=11 // pred_region
          _
        $region36: #{s4_model_forward.1} parent=11 // pred_fallthru
          _
      $region12: #{s4_model_forward.1} parent=5 // pred_fallthru
        _
      %p383 = scmp.lt.s32.totalorder %s19, 2
      // Predicated region
      $region37: #{s4_model_forward.1} parent=5 // pred_check
        %p384 = pneg %p383
      $region38: #{s4_model_forward.1} parent=5 // pred_check_branch
        %386 = sbr.rel (%p384) target = $region40
      $region39: #{s4_model_forward.1} parent=5 // pred_region
        // Predicated region
        $region41: #{s4_model_forward.1} parent=39 // pred_check
          %p387 = pneg %p140
        $region42: #{s4_model_forward.1} parent=39 // pred_check_branch
          %389 = sbr.rel (%p387) target = $region44
        $region43: #{s4_model_forward.1} parent=39 // pred_region
          %p390 = scmp.lt.s32.totalorder %s27, 1
          %s391 = scalar_select %p390, %s27, 1
          %s392 = smul.addr %s391, 2
          %s393 = smul.addr %s392, 8
          %s394 = scalar_lea.vmem %s4, %s393
        $region44: #{s4_model_forward.1} parent=39 // pred_fallthru
          _
        // Predicated region
        $region45: #{s4_model_forward.1} parent=39 // pred_check
          %p395 = pneg %p166
        $region46: #{s4_model_forward.1} parent=39 // pred_check_branch
          %397 = sbr.rel (%p395) target = $region48
        $region47: #{s4_model_forward.1} parent=39 // pred_region
          %p398 = scmp.lt.s32.totalorder %s27, 1
          %s399 = scalar_select %p398, %s27, 1
          %s400 = scalar_lea.vmem %s5, %s399
        $region48: #{s4_model_forward.1} parent=39 // pred_fallthru
          _
        // Predicated region
        $region49: #{s4_model_forward.1} parent=39 // pred_check
          %p401 = pneg %p192
        $region50: #{s4_model_forward.1} parent=39 // pred_check_branch
          %403 = sbr.rel (%p401) target = $region52
        $region51: #{s4_model_forward.1} parent=39 // pred_region
          %p404 = scmp.lt.s32.totalorder %s27, 1
          %s405 = scalar_select %p404, %s27, 1
          %s406 = smul.addr %s405, 32
          %s407 = smul.addr %s406, 4
          %s408 = scalar_lea.vmem %s6, %s407
        $region52: #{s4_model_forward.1} parent=39 // pred_fallthru
          _
        // Predicated region
        $region53: #{s4_model_forward.1} parent=39 // pred_check
          %p409 = pneg %p218
        $region54: #{s4_model_forward.1} parent=39 // pred_check_branch
          %411 = sbr.rel (%p409) target = $region56
        $region55: #{s4_model_forward.1} parent=39 // pred_region
          %p412 = scmp.lt.s32.totalorder %s27, 1
          %s413 = scalar_select %p412, %s27, 1
          %s414 = smul.addr %s413, 2
          %s415 = scalar_lea.vmem %s7, %s414
        $region56: #{s4_model_forward.1} parent=39 // pred_fallthru
          _
        // Predicated region
        $region57: #{s4_model_forward.1} parent=39 // pred_check
          %p416 = pneg %p244
        $region58: #{s4_model_forward.1} parent=39 // pred_check_branch
          %418 = sbr.rel (%p416) target = $region60
        $region59: #{s4_model_forward.1} parent=39 // pred_region
          %p419 = scmp.lt.s32.totalorder %s27, 1
          %s420 = scalar_select %p419, %s27, 1
          %s421 = scalar_lea.vmem %s8, %s420
        $region60: #{s4_model_forward.1} parent=39 // pred_fallthru
          _
        // Predicated region
        $region61: #{s4_model_forward.1} parent=39 // pred_check
          %p422 = pneg %p270
        $region62: #{s4_model_forward.1} parent=39 // pred_check_branch
          %424 = sbr.rel (%p422) target = $region64
        $region63: #{s4_model_forward.1} parent=39 // pred_region
          %p425 = scmp.lt.s32.totalorder %s27, 1
          %s426 = scalar_select %p425, %s27, 1
          %s427 = scalar_lea.vmem %s9, %s426
        $region64: #{s4_model_forward.1} parent=39 // pred_fallthru
          _
      $region40: #{s4_model_forward.1} parent=5 // pred_fallthru
        _
      %p428 = scmp.le.s32.totalorder 1, %s19
      %p429 = scmp.lt.s32.totalorder %s19, 3
      %p430 = pnand %p428, %p429
      %p431 = pneg %p430
      // Predicated region
      $region65: #{s4_model_forward.1} parent=5 // pred_check
        _
      $region66: #{s4_model_forward.1} parent=5 // pred_check_branch
        %433 = sbr.rel (%p430) target = $region68
      $region67: #{s4_model_forward.1} parent=5 // pred_region
        %s434 = ssub.s32 %s19, 1
        %s435 = smul.u32 4, %s28
        %p436 = scmp.lt.s32.totalorder %s435, 3
        %s437 = scalar_select %p436, %s435, 3
        %s438 = smul.addr %s437, 8
        %s439 = scalar_lea.vmem %s0, %s438
        %p440 = pneg %p57
        %p441 = pneg %p54
        %p442 = pneg %p78
        %p443 = pneg %p75
        %p444 = pneg %p99
        %p445 = pneg %p96
        %p446 = pneg %p120
        %p447 = pneg %p117
        %p448 = scmp.lt.s32.totalorder %s29, 1
        %s449 = scalar_select %p448, %s29, 1
        %s450 = smul.addr %s449, 2
        %s451 = smul.addr %s450, 8
        %s452 = scalar_lea.vmem %s4, %s451
        %p453 = pneg %p146
        %p454 = pneg %p143
        %p455 = scmp.lt.s32.totalorder %s29, 1
        %s456 = scalar_select %p455, %s29, 1
        %s457 = scalar_lea.vmem %s5, %s456
        %p458 = pneg %p172
        %p459 = pneg %p169
        %p460 = scmp.lt.s32.totalorder %s29, 1
        %s461 = scalar_select %p460, %s29, 1
        %s462 = smul.addr %s461, 32
        %s463 = smul.addr %s462, 4
        %s464 = scalar_lea.vmem %s6, %s463
        %p465 = pneg %p198
        %p466 = pneg %p195
        %p467 = scmp.lt.s32.totalorder %s29, 1
        %s468 = scalar_select %p467, %s29, 1
        %s469 = smul.addr %s468, 2
        %s470 = scalar_lea.vmem %s7, %s469
        %p471 = pneg %p224
        %p472 = pneg %p221
        %p473 = scmp.lt.s32.totalorder %s29, 1
        %s474 = scalar_select %p473, %s29, 1
        %s475 = scalar_lea.vmem %s8, %s474
        %p476 = pneg %p250
        %p477 = pneg %p247
        %p478 = scmp.lt.s32.totalorder %s29, 1
        %s479 = scalar_select %p478, %s29, 1
        %s480 = scalar_lea.vmem %s9, %s479
        %p481 = pneg %p276
        %p482 = pneg %p273
        %p483 = pneg %p297
        %p484 = pneg %p294
        %p485 = pneg %p318
        %p486 = pneg %p315
        %p487 = pneg %p344
        %p488 = pneg %p341
        %s489 = smul.u32 4, %s28
        %p490 = scmp.lt.s32.totalorder %s489, 3
        %s491 = scalar_select %p490, %s489, 3
        %s492 = smul.addr %s491, 8
        %s493 = scalar_lea.vmem %s0, %s492
        %s494 = smul.u32 4, %s28
        %p495 = scmp.lt.s32.totalorder %s29, 1
        %s496 = scalar_select %p495, %s29, 1
        %s497 = smul.addr %s496, 2
        %s498 = smul.addr %s497, 8
        %s499 = scalar_lea.vmem %s4, %s498
        %p500 = scmp.lt.s32.totalorder %s29, 1
        %s501 = scalar_select %p500, %s29, 1
        %s502 = scalar_lea.vmem %s5, %s501
        %p503 = scmp.lt.s32.totalorder %s29, 1
        %s504 = scalar_select %p503, %s29, 1
        %s505 = smul.addr %s504, 32
        %s506 = smul.addr %s505, 4
        %s507 = scalar_lea.vmem %s6, %s506
        %p508 = scmp.lt.s32.totalorder %s29, 1
        %s509 = scalar_select %p508, %s29, 1
        %s510 = smul.addr %s509, 2
        %s511 = scalar_lea.vmem %s7, %s510
        %p512 = scmp.lt.s32.totalorder %s29, 1
        %s513 = scalar_select %p512, %s29, 1
        %s514 = scalar_lea.vmem %s8, %s513
        %p515 = scmp.lt.s32.totalorder %s29, 1
        %s516 = scalar_select %p515, %s29, 1
        %s517 = scalar_lea.vmem %s9, %s516
        %p518 = scmp.eq.s32.totalorder %s29, 0
        // Predicated region
        $region69: #{s4_model_forward.1} parent=67 // pred_check
          %p519 = pneg %p518
        $region70: #{s4_model_forward.1} parent=67 // pred_check_branch
          %521 = sbr.rel (%p519) target = $region72
        $region71: #{s4_model_forward.1} parent=67 // pred_region
          %v522 = vld [vmem:[%s493] sm:$0xff]
          %v523 = vld [vmem:[%s493 + $0x8] sm:$0xff]
          %v524 = vld [vmem:[%s493 + $0x10] sm:$0xff]
          %v525 = vld [vmem:[%s493 + $0x18] sm:$0xff]
          %v526 = vld [vmem:[%s2] sm:$0x3]
          %528 = vset.pattern.permute.xlu0 0
          %529 = vperm.xlu0 %528, %v522
          %v530 = vpop.permute.xlu0 %529
          %533 = vset.pattern.permute.xlu0 0
          %534 = vperm.xlu0 %533, %v523
          %v535 = vpop.permute.xlu0 %534
          %538 = vset.pattern.permute.xlu0 0
          %539 = vperm.xlu0 %538, %v524
          %v540 = vpop.permute.xlu0 %539
          %543 = vset.pattern.permute.xlu0 0
          %544 = vperm.xlu0 %543, %v525
          %v545 = vpop.permute.xlu0 %544
          %v547 = vperm.slane %v526, 0
          %v548 = vmul.f32 %v530, %v547
          %v549 = vmul.f32 %v535, %v547
          %v550 = vmul.f32 %v540, %v547
          %v551 = vmul.f32 %v545, %v547
          %552 = vset.pattern.permute.xlu0 1
          %553 = vperm.xlu0 %552, %v522
          %v554 = vpop.permute.xlu0 %553
          %556 = vset.pattern.permute.xlu0 1
          %557 = vperm.xlu0 %556, %v523
          %v558 = vpop.permute.xlu0 %557
          %560 = vset.pattern.permute.xlu0 1
          %561 = vperm.xlu0 %560, %v524
          %v562 = vpop.permute.xlu0 %561
          %564 = vset.pattern.permute.xlu0 1
          %565 = vperm.xlu0 %564, %v525
          %v566 = vpop.permute.xlu0 %565
          %v568 = vperm.slane %v526, 1
          %v569 = vmul.f32 %v554, %v568
          %v570 = vmul.f32 %v558, %v568
          %v571 = vmul.f32 %v562, %v568
          %v572 = vmul.f32 %v566, %v568
          %v573 = vadd.f32 %v548, %v569
          %v574 = vadd.f32 %v549, %v570
          %v575 = vadd.f32 %v550, %v571
          %v576 = vadd.f32 %v551, %v572
          %v577 = vld [vmem:[%s3] sm:$0x1]
          %v579 = vperm.slane %v577, 0
          %v581 = vadd.f32 %v573, %v579
          %v582 = vadd.f32 %v574, %v579
          %v583 = vadd.f32 %v575, %v579
          %v584 = vadd.f32 %v576, %v579
          %585 = vst [vmem:[#allocation2] sm:$0xff] %v581
          %586 = vst [vmem:[#allocation2 + $0x8] sm:$0xff] %v582
          %587 = vst [vmem:[#allocation2 + $0x10] sm:$0xff] %v583
          %588 = vst [vmem:[#allocation2 + $0x18] sm:$0xff] %v584
        $region72: #{s4_model_forward.1} parent=67 // pred_fallthru
          _
        %v589 = vld [vmem:[#allocation2] sm:$0xff]
        %v590 = vld [vmem:[#allocation2 + $0x8] sm:$0xff]
        %v591 = vld [vmem:[#allocation2 + $0x10] sm:$0xff]
        %v592 = vld [vmem:[#allocation2 + $0x18] sm:$0xff]
        %v593 = vld [vmem:[%s499] sm:$0xff]
        %v594 = vld [vmem:[%s499 + $0x8] sm:$0xff]
        %v595 = vlaneseq
        %v596 = vshrl.u32 %v595, 7
        %v597 = vadd.s32 %v596, 8
        %v598 = vadd.s32 %v596, 16
        %v599 = vadd.s32 %v596, 24
        %vm600 = vcmp.lt.s32.totalorder %v596, 0
        %v601 = vsub.s32 0, %v596
        %v602 = vsel %vm600, %v601, %v596
        %v603 = vshrl.u32 %v602, 4
        %v604 = vand.u32 %v602, 15
        %v605 = vsub.s32 0, %v604
        %v606 = vsel %vm600, %v605, %v604
        %vm607 = vcmp.lt.s32.totalorder %v597, 0
        %v608 = vsub.s32 0, %v597
        %v609 = vsel %vm607, %v608, %v597
        %v610 = vshrl.u32 %v609, 4
        %v611 = vand.u32 %v609, 15
        %v612 = vsub.s32 0, %v611
        %v613 = vsel %vm607, %v612, %v611
        %vm614 = vcmp.lt.s32.totalorder %v598, 0
        %v615 = vsub.s32 0, %v598
        %v616 = vsel %vm614, %v615, %v598
        %v617 = vshrl.u32 %v616, 4
        %v618 = vand.u32 %v616, 15
        %v619 = vsub.s32 0, %v618
        %v620 = vsel %vm614, %v619, %v618
        %vm621 = vcmp.lt.s32.totalorder %v599, 0
        %v622 = vsub.s32 0, %v599
        %v623 = vsel %vm621, %v622, %v599
        %v624 = vshrl.u32 %v623, 4
        %v625 = vand.u32 %v623, 15
        %v626 = vsub.s32 0, %v625
        %v627 = vsel %vm621, %v626, %v625
        %vm628 = vcmp.ne.s32.totalorder %v606, 0
        %vm629 = vcmp.ne.s32.totalorder %v613, 0
        %vm630 = vcmp.ne.s32.totalorder %v620, 0
        %vm631 = vcmp.ne.s32.totalorder %v627, 0
        %vm632 = vcmp.lt.s32.totalorder %v606, 0
        %vm633 = vcmp.lt.s32.totalorder %v613, 0
        %vm634 = vcmp.lt.s32.totalorder %v620, 0
        %vm635 = vcmp.lt.s32.totalorder %v627, 0
        %vm636 = vmand %vm632, %vm628
        %vm637 = vmand %vm633, %vm629
        %vm638 = vmand %vm634, %vm630
        %vm639 = vmand %vm635, %vm631
        %v640 = vadd.s32 %v606, 16
        %v641 = vadd.s32 %v613, 16
        %v642 = vadd.s32 %v620, 16
        %v643 = vadd.s32 %v627, 16
        %v644 = vsel %vm636, %v640, %v606
        %v645 = vsel %vm637, %v641, %v613
        %v646 = vsel %vm638, %v642, %v620
        %v647 = vsel %vm639, %v643, %v627
        %v648 = vperm.slane %v593, 0
        %v649 = vmul.f32 %v589, %v648
        %v650 = vmul.f32 %v590, %v648
        %v651 = vmul.f32 %v591, %v648
        %v652 = vmul.f32 %v592, %v648
        %v653 = vrot.slane %v589, 7
        %v654 = vrot.slane %v590, 7
        %v655 = vrot.slane %v591, 7
        %v656 = vrot.slane %v592, 7
        %vm657 = vcmp.lt.s32.totalorder %v596, 1
        %v658 = vsel %vm657, %v655, %v656
        %v659 = vsel %vm657, %v654, %v655
        %v660 = vsel %vm657, %v653, %v654
        %v661 = vsel %vm657, %v656, %v653
        %vm662 = vcmp.ge.s32.totalorder %v644, 1
        %vm663 = vcmp.ge.s32.totalorder %v645, 1
        %vm664 = vcmp.ge.s32.totalorder %v646, 1
        %vm665 = vcmp.ge.s32.totalorder %v647, 1
        %v666 = vsel %vm662, 1, 0
        %v667 = vsel %vm663, 1, 0
        %v668 = vsel %vm664, 1, 0
        %v669 = vsel %vm665, 1, 0
        %vm670 = vcmp.eq.s32.totalorder %v666, 1
        %vm671 = vcmp.eq.s32.totalorder %v667, 1
        %vm672 = vcmp.eq.s32.totalorder %v668, 1
        %vm673 = vcmp.eq.s32.totalorder %v669, 1
        %v674 = vsel %vm670, %v661, 0.0
        %v675 = vsel %vm671, %v660, 0.0
        %v676 = vsel %vm672, %v659, 0.0
        %v677 = vsel %vm673, %v658, 0.0
        %v678 = vperm.slane %v593, 1
        %v679 = vmul.f32 %v674, %v678
        %v680 = vmul.f32 %v675, %v678
        %v681 = vmul.f32 %v676, %v678
        %v682 = vmul.f32 %v677, %v678
        %v683 = vadd.f32 %v679, 0.0
        %v684 = vadd.f32 %v680, 0.0
        %v685 = vadd.f32 %v681, 0.0
        %v686 = vadd.f32 %v682, 0.0
        %v687 = vrot.slane %v661, 7
        %v688 = vrot.slane %v660, 7
        %v689 = vrot.slane %v659, 7
        %v690 = vrot.slane %v658, 7
        %v691 = vsel %vm657, %v689, %v690
        %v692 = vsel %vm657, %v688, %v689
        %v693 = vsel %vm657, %v687, %v688
        %v694 = vsel %vm657, %v690, %v687
        %vm695 = vcmp.ge.s32.totalorder %v644, 2
        %vm696 = vcmp.ge.s32.totalorder %v645, 2
        %vm697 = vcmp.ge.s32.totalorder %v646, 2
        %vm698 = vcmp.ge.s32.totalorder %v647, 2
        %v699 = vsel %vm695, 1, 0
        %v700 = vsel %vm696, 1, 0
        %v701 = vsel %vm697, 1, 0
        %v702 = vsel %vm698, 1, 0
        %vm703 = vcmp.eq.s32.totalorder %v699, 1
        %vm704 = vcmp.eq.s32.totalorder %v700, 1
        %vm705 = vcmp.eq.s32.totalorder %v701, 1
        %vm706 = vcmp.eq.s32.totalorder %v702, 1
        %v707 = vsel %vm703, %v694, 0.0
        %v708 = vsel %vm704, %v693, 0.0
        %v709 = vsel %vm705, %v692, 0.0
        %v710 = vsel %vm706, %v691, 0.0
        %v711 = vperm.slane %v593, 2
        %v712 = vmul.f32 %v707, %v711
        %v713 = vmul.f32 %v708, %v711
        %v714 = vmul.f32 %v709, %v711
        %v715 = vmul.f32 %v710, %v711
        %v716 = vadd.f32 %v649, %v712
        %v717 = vadd.f32 %v650, %v713
        %v718 = vadd.f32 %v651, %v714
        %v719 = vadd.f32 %v652, %v715
        %v720 = vrot.slane %v694, 7
        %v721 = vrot.slane %v693, 7
        %v722 = vrot.slane %v692, 7
        %v723 = vrot.slane %v691, 7
        %v724 = vsel %vm657, %v722, %v723
        %v725 = vsel %vm657, %v721, %v722
        %v726 = vsel %vm657, %v720, %v721
        %v727 = vsel %vm657, %v723, %v720
        %vm728 = vcmp.ge.s32.totalorder %v644, 3
        %vm729 = vcmp.ge.s32.totalorder %v645, 3
        %vm730 = vcmp.ge.s32.totalorder %v646, 3
        %vm731 = vcmp.ge.s32.totalorder %v647, 3
        %v732 = vsel %vm728, 1, 0
        %v733 = vsel %vm729, 1, 0
        %v734 = vsel %vm730, 1, 0
        %v735 = vsel %vm731, 1, 0
        %vm736 = vcmp.eq.s32.totalorder %v732, 1
        %vm737 = vcmp.eq.s32.totalorder %v733, 1
        %vm738 = vcmp.eq.s32.totalorder %v734, 1
        %vm739 = vcmp.eq.s32.totalorder %v735, 1
        %v740 = vsel %vm736, %v727, 0.0
        %v741 = vsel %vm737, %v726, 0.0
        %v742 = vsel %vm738, %v725, 0.0
        %v743 = vsel %vm739, %v724, 0.0
        %v744 = vperm.slane %v593, 3
        %v745 = vmul.f32 %v740, %v744
        %v746 = vmul.f32 %v741, %v744
        %v747 = vmul.f32 %v742, %v744
        %v748 = vmul.f32 %v743, %v744
        %v749 = vadd.f32 %v683, %v745
        %v750 = vadd.f32 %v684, %v746
        %v751 = vadd.f32 %v685, %v747
        %v752 = vadd.f32 %v686, %v748
        %v753 = vrot.slane %v727, 7
        %v754 = vrot.slane %v726, 7
        %v755 = vrot.slane %v725, 7
        %v756 = vrot.slane %v724, 7
        %v757 = vsel %vm657, %v755, %v756
        %v758 = vsel %vm657, %v754, %v755
        %v759 = vsel %vm657, %v753, %v754
        %v760 = vsel %vm657, %v756, %v753
        %vm761 = vcmp.ge.s32.totalorder %v644, 4
        %vm762 = vcmp.ge.s32.totalorder %v645, 4
        %vm763 = vcmp.ge.s32.totalorder %v646, 4
        %vm764 = vcmp.ge.s32.totalorder %v647, 4
        %v765 = vsel %vm761, 1, 0
        %v766 = vsel %vm762, 1, 0
        %v767 = vsel %vm763, 1, 0
        %v768 = vsel %vm764, 1, 0
        %vm769 = vcmp.eq.s32.totalorder %v765, 1
        %vm770 = vcmp.eq.s32.totalorder %v766, 1
        %vm771 = vcmp.eq.s32.totalorder %v767, 1
        %vm772 = vcmp.eq.s32.totalorder %v768, 1
        %v773 = vsel %vm769, %v760, 0.0
        %v774 = vsel %vm770, %v759, 0.0
        %v775 = vsel %vm771, %v758, 0.0
        %v776 = vsel %vm772, %v757, 0.0
        %v777 = vperm.slane %v593, 4
        %v778 = vmul.f32 %v773, %v777
        %v779 = vmul.f32 %v774, %v777
        %v780 = vmul.f32 %v775, %v777
        %v781 = vmul.f32 %v776, %v777
        %v782 = vadd.f32 %v716, %v778
        %v783 = vadd.f32 %v717, %v779
        %v784 = vadd.f32 %v718, %v780
        %v785 = vadd.f32 %v719, %v781
        %v786 = vrot.slane %v760, 7
        %v787 = vrot.slane %v759, 7
        %v788 = vrot.slane %v758, 7
        %v789 = vrot.slane %v757, 7
        %v790 = vsel %vm657, %v788, %v789
        %v791 = vsel %vm657, %v787, %v788
        %v792 = vsel %vm657, %v786, %v787
        %v793 = vsel %vm657, %v789, %v786
        %vm794 = vcmp.ge.s32.totalorder %v644, 5
        %vm795 = vcmp.ge.s32.totalorder %v645, 5
        %vm796 = vcmp.ge.s32.totalorder %v646, 5
        %vm797 = vcmp.ge.s32.totalorder %v647, 5
        %v798 = vsel %vm794, 1, 0
        %v799 = vsel %vm795, 1, 0
        %v800 = vsel %vm796, 1, 0
        %v801 = vsel %vm797, 1, 0
        %vm802 = vcmp.eq.s32.totalorder %v798, 1
        %vm803 = vcmp.eq.s32.totalorder %v799, 1
        %vm804 = vcmp.eq.s32.totalorder %v800, 1
        %vm805 = vcmp.eq.s32.totalorder %v801, 1
        %v806 = vsel %vm802, %v793, 0.0
        %v807 = vsel %vm803, %v792, 0.0
        %v808 = vsel %vm804, %v791, 0.0
        %v809 = vsel %vm805, %v790, 0.0
        %v810 = vperm.slane %v593, 5
        %v811 = vmul.f32 %v806, %v810
        %v812 = vmul.f32 %v807, %v810
        %v813 = vmul.f32 %v808, %v810
        %v814 = vmul.f32 %v809, %v810
        %v815 = vadd.f32 %v749, %v811
        %v816 = vadd.f32 %v750, %v812
        %v817 = vadd.f32 %v751, %v813
        %v818 = vadd.f32 %v752, %v814
        %v819 = vrot.slane %v793, 7
        %v820 = vrot.slane %v792, 7
        %v821 = vrot.slane %v791, 7
        %v822 = vrot.slane %v790, 7
        %v823 = vsel %vm657, %v821, %v822
        %v824 = vsel %vm657, %v820, %v821
        %v825 = vsel %vm657, %v819, %v820
        %v826 = vsel %vm657, %v822, %v819
        %vm827 = vcmp.ge.s32.totalorder %v644, 6
        %vm828 = vcmp.ge.s32.totalorder %v645, 6
        %vm829 = vcmp.ge.s32.totalorder %v646, 6
        %vm830 = vcmp.ge.s32.totalorder %v647, 6
        %v831 = vsel %vm827, 1, 0
        %v832 = vsel %vm828, 1, 0
        %v833 = vsel %vm829, 1, 0
        %v834 = vsel %vm830, 1, 0
        %vm835 = vcmp.eq.s32.totalorder %v831, 1
        %vm836 = vcmp.eq.s32.totalorder %v832, 1
        %vm837 = vcmp.eq.s32.totalorder %v833, 1
        %vm838 = vcmp.eq.s32.totalorder %v834, 1
        %v839 = vsel %vm835, %v826, 0.0
        %v840 = vsel %vm836, %v825, 0.0
        %v841 = vsel %vm837, %v824, 0.0
        %v842 = vsel %vm838, %v823, 0.0
        %v843 = vperm.slane %v593, 6
        %v844 = vmul.f32 %v839, %v843
        %v845 = vmul.f32 %v840, %v843
        %v846 = vmul.f32 %v841, %v843
        %v847 = vmul.f32 %v842, %v843
        %v848 = vadd.f32 %v782, %v844
        %v849 = vadd.f32 %v783, %v845
        %v850 = vadd.f32 %v784, %v846
        %v851 = vadd.f32 %v785, %v847
        %v852 = vrot.slane %v826, 7
        %v853 = vrot.slane %v825, 7
        %v854 = vrot.slane %v824, 7
        %v855 = vrot.slane %v823, 7
        %v856 = vsel %vm657, %v854, %v855
        %v857 = vsel %vm657, %v853, %v854
        %v858 = vsel %vm657, %v852, %v853
        %v859 = vsel %vm657, %v855, %v852
        %vm860 = vcmp.ge.s32.totalorder %v644, 7
        %vm861 = vcmp.ge.s32.totalorder %v645, 7
        %vm862 = vcmp.ge.s32.totalorder %v646, 7
        %vm863 = vcmp.ge.s32.totalorder %v647, 7
        %v864 = vsel %vm860, 1, 0
        %v865 = vsel %vm861, 1, 0
        %v866 = vsel %vm862, 1, 0
        %v867 = vsel %vm863, 1, 0
        %vm868 = vcmp.eq.s32.totalorder %v864, 1
        %vm869 = vcmp.eq.s32.totalorder %v865, 1
        %vm870 = vcmp.eq.s32.totalorder %v866, 1
        %vm871 = vcmp.eq.s32.totalorder %v867, 1
        %v872 = vsel %vm868, %v859, 0.0
        %v873 = vsel %vm869, %v858, 0.0
        %v874 = vsel %vm870, %v857, 0.0
        %v875 = vsel %vm871, %v856, 0.0
        %v876 = vperm.slane %v593, 7
        %v877 = vmul.f32 %v872, %v876
        %v878 = vmul.f32 %v873, %v876
        %v879 = vmul.f32 %v874, %v876
        %v880 = vmul.f32 %v875, %v876
        %v881 = vadd.f32 %v815, %v877
        %v882 = vadd.f32 %v816, %v878
        %v883 = vadd.f32 %v817, %v879
        %v884 = vadd.f32 %v818, %v880
        %v885 = vrot.slane %v859, 7
        %v886 = vrot.slane %v858, 7
        %v887 = vrot.slane %v857, 7
        %v888 = vrot.slane %v856, 7
        %v889 = vsel %vm657, %v887, %v888
        %v890 = vsel %vm657, %v886, %v887
        %v891 = vsel %vm657, %v885, %v886
        %v892 = vsel %vm657, %v888, %v885
        %vm893 = vcmp.ge.s32.totalorder %v644, 8
        %vm894 = vcmp.ge.s32.totalorder %v645, 8
        %vm895 = vcmp.ge.s32.totalorder %v646, 8
        %vm896 = vcmp.ge.s32.totalorder %v647, 8
        %v897 = vsel %vm893, 1, 0
        %v898 = vsel %vm894, 1, 0
        %v899 = vsel %vm895, 1, 0
        %v900 = vsel %vm896, 1, 0
        %vm901 = vcmp.eq.s32.totalorder %v897, 1
        %vm902 = vcmp.eq.s32.totalorder %v898, 1
        %vm903 = vcmp.eq.s32.totalorder %v899, 1
        %vm904 = vcmp.eq.s32.totalorder %v900, 1
        %v905 = vsel %vm901, %v892, 0.0
        %v906 = vsel %vm902, %v891, 0.0
        %v907 = vsel %vm903, %v890, 0.0
        %v908 = vsel %vm904, %v889, 0.0
        %v909 = vperm.slane %v594, 0
        %v910 = vmul.f32 %v905, %v909
        %v911 = vmul.f32 %v906, %v909
        %v912 = vmul.f32 %v907, %v909
        %v913 = vmul.f32 %v908, %v909
        %v914 = vadd.f32 %v848, %v910
        %v915 = vadd.f32 %v849, %v911
        %v916 = vadd.f32 %v850, %v912
        %v917 = vadd.f32 %v851, %v913
        %v918 = vrot.slane %v892, 7
        %v919 = vrot.slane %v891, 7
        %v920 = vrot.slane %v890, 7
        %v921 = vrot.slane %v889, 7
        %v922 = vsel %vm657, %v920, %v921
        %v923 = vsel %vm657, %v919, %v920
        %v924 = vsel %vm657, %v918, %v919
        %v925 = vsel %vm657, %v921, %v918
        %vm926 = vcmp.ge.s32.totalorder %v644, 9
        %vm927 = vcmp.ge.s32.totalorder %v645, 9
        %vm928 = vcmp.ge.s32.totalorder %v646, 9
        %vm929 = vcmp.ge.s32.totalorder %v647, 9
        %v930 = vsel %vm926, 1, 0
        %v931 = vsel %vm927, 1, 0
        %v932 = vsel %vm928, 1, 0
        %v933 = vsel %vm929, 1, 0
        %vm934 = vcmp.eq.s32.totalorder %v930, 1
        %vm935 = vcmp.eq.s32.totalorder %v931, 1
        %vm936 = vcmp.eq.s32.totalorder %v932, 1
        %vm937 = vcmp.eq.s32.totalorder %v933, 1
        %v938 = vsel %vm934, %v925, 0.0
        %v939 = vsel %vm935, %v924, 0.0
        %v940 = vsel %vm936, %v923, 0.0
        %v941 = vsel %vm937, %v922, 0.0
        %v942 = vperm.slane %v594, 1
        %v943 = vmul.f32 %v938, %v942
        %v944 = vmul.f32 %v939, %v942
        %v945 = vmul.f32 %v940, %v942
        %v946 = vmul.f32 %v941, %v942
        %v947 = vadd.f32 %v881, %v943
        %v948 = vadd.f32 %v882, %v944
        %v949 = vadd.f32 %v883, %v945
        %v950 = vadd.f32 %v884, %v946
        %v951 = vrot.slane %v925, 7
        %v952 = vrot.slane %v924, 7
        %v953 = vrot.slane %v923, 7
        %v954 = vrot.slane %v922, 7
        %v955 = vsel %vm657, %v953, %v954
        %v956 = vsel %vm657, %v952, %v953
        %v957 = vsel %vm657, %v951, %v952
        %v958 = vsel %vm657, %v954, %v951
        %vm959 = vcmp.ge.s32.totalorder %v644, 10
        %vm960 = vcmp.ge.s32.totalorder %v645, 10
        %vm961 = vcmp.ge.s32.totalorder %v646, 10
        %vm962 = vcmp.ge.s32.totalorder %v647, 10
        %v963 = vsel %vm959, 1, 0
        %v964 = vsel %vm960, 1, 0
        %v965 = vsel %vm961, 1, 0
        %v966 = vsel %vm962, 1, 0
        %vm967 = vcmp.eq.s32.totalorder %v963, 1
        %vm968 = vcmp.eq.s32.totalorder %v964, 1
        %vm969 = vcmp.eq.s32.totalorder %v965, 1
        %vm970 = vcmp.eq.s32.totalorder %v966, 1
        %v971 = vsel %vm967, %v958, 0.0
        %v972 = vsel %vm968, %v957, 0.0
        %v973 = vsel %vm969, %v956, 0.0
        %v974 = vsel %vm970, %v955, 0.0
        %v975 = vperm.slane %v594, 2
        %v976 = vmul.f32 %v971, %v975
        %v977 = vmul.f32 %v972, %v975
        %v978 = vmul.f32 %v973, %v975
        %v979 = vmul.f32 %v974, %v975
        %v980 = vadd.f32 %v914, %v976
        %v981 = vadd.f32 %v915, %v977
        %v982 = vadd.f32 %v916, %v978
        %v983 = vadd.f32 %v917, %v979
        %v984 = vrot.slane %v958, 7
        %v985 = vrot.slane %v957, 7
        %v986 = vrot.slane %v956, 7
        %v987 = vrot.slane %v955, 7
        %v988 = vsel %vm657, %v986, %v987
        %v989 = vsel %vm657, %v985, %v986
        %v990 = vsel %vm657, %v984, %v985
        %v991 = vsel %vm657, %v987, %v984
        %vm992 = vcmp.ge.s32.totalorder %v644, 11
        %vm993 = vcmp.ge.s32.totalorder %v645, 11
        %vm994 = vcmp.ge.s32.totalorder %v646, 11
        %vm995 = vcmp.ge.s32.totalorder %v647, 11
        %v996 = vsel %vm992, 1, 0
        %v997 = vsel %vm993, 1, 0
        %v998 = vsel %vm994, 1, 0
        %v999 = vsel %vm995, 1, 0
        %vm1000 = vcmp.eq.s32.totalorder %v996, 1
        %vm1001 = vcmp.eq.s32.totalorder %v997, 1
        %vm1002 = vcmp.eq.s32.totalorder %v998, 1
        %vm1003 = vcmp.eq.s32.totalorder %v999, 1
        %v1004 = vsel %vm1000, %v991, 0.0
        %v1005 = vsel %vm1001, %v990, 0.0
        %v1006 = vsel %vm1002, %v989, 0.0
        %v1007 = vsel %vm1003, %v988, 0.0
        %v1008 = vperm.slane %v594, 3
        %v1009 = vmul.f32 %v1004, %v1008
        %v1010 = vmul.f32 %v1005, %v1008
        %v1011 = vmul.f32 %v1006, %v1008
        %v1012 = vmul.f32 %v1007, %v1008
        %v1013 = vadd.f32 %v947, %v1009
        %v1014 = vadd.f32 %v948, %v1010
        %v1015 = vadd.f32 %v949, %v1011
        %v1016 = vadd.f32 %v950, %v1012
        %v1017 = vrot.slane %v991, 7
        %v1018 = vrot.slane %v990, 7
        %v1019 = vrot.slane %v989, 7
        %v1020 = vrot.slane %v988, 7
        %v1021 = vsel %vm657, %v1019, %v1020
        %v1022 = vsel %vm657, %v1018, %v1019
        %v1023 = vsel %vm657, %v1017, %v1018
        %v1024 = vsel %vm657, %v1020, %v1017
        %vm1025 = vcmp.ge.s32.totalorder %v644, 12
        %vm1026 = vcmp.ge.s32.totalorder %v645, 12
        %vm1027 = vcmp.ge.s32.totalorder %v646, 12
        %vm1028 = vcmp.ge.s32.totalorder %v647, 12
        %v1029 = vsel %vm1025, 1, 0
        %v1030 = vsel %vm1026, 1, 0
        %v1031 = vsel %vm1027, 1, 0
        %v1032 = vsel %vm1028, 1, 0
        %vm1033 = vcmp.eq.s32.totalorder %v1029, 1
        %vm1034 = vcmp.eq.s32.totalorder %v1030, 1
        %vm1035 = vcmp.eq.s32.totalorder %v1031, 1
        %vm1036 = vcmp.eq.s32.totalorder %v1032, 1
        %v1037 = vsel %vm1033, %v1024, 0.0
        %v1038 = vsel %vm1034, %v1023, 0.0
        %v1039 = vsel %vm1035, %v1022, 0.0
        %v1040 = vsel %vm1036, %v1021, 0.0
        %v1041 = vperm.slane %v594, 4
        %v1042 = vmul.f32 %v1037, %v1041
        %v1043 = vmul.f32 %v1038, %v1041
        %v1044 = vmul.f32 %v1039, %v1041
        %v1045 = vmul.f32 %v1040, %v1041
        %v1046 = vadd.f32 %v980, %v1042
        %v1047 = vadd.f32 %v981, %v1043
        %v1048 = vadd.f32 %v982, %v1044
        %v1049 = vadd.f32 %v983, %v1045
        %v1050 = vrot.slane %v1024, 7
        %v1051 = vrot.slane %v1023, 7
        %v1052 = vrot.slane %v1022, 7
        %v1053 = vrot.slane %v1021, 7
        %v1054 = vsel %vm657, %v1052, %v1053
        %v1055 = vsel %vm657, %v1051, %v1052
        %v1056 = vsel %vm657, %v1050, %v1051
        %v1057 = vsel %vm657, %v1053, %v1050
        %vm1058 = vcmp.ge.s32.totalorder %v644, 13
        %vm1059 = vcmp.ge.s32.totalorder %v645, 13
        %vm1060 = vcmp.ge.s32.totalorder %v646, 13
        %vm1061 = vcmp.ge.s32.totalorder %v647, 13
        %v1062 = vsel %vm1058, 1, 0
        %v1063 = vsel %vm1059, 1, 0
        %v1064 = vsel %vm1060, 1, 0
        %v1065 = vsel %vm1061, 1, 0
        %vm1066 = vcmp.eq.s32.totalorder %v1062, 1
        %vm1067 = vcmp.eq.s32.totalorder %v1063, 1
        %vm1068 = vcmp.eq.s32.totalorder %v1064, 1
        %vm1069 = vcmp.eq.s32.totalorder %v1065, 1
        %v1070 = vsel %vm1066, %v1057, 0.0
        %v1071 = vsel %vm1067, %v1056, 0.0
        %v1072 = vsel %vm1068, %v1055, 0.0
        %v1073 = vsel %vm1069, %v1054, 0.0
        %v1074 = vperm.slane %v594, 5
        %v1075 = vmul.f32 %v1070, %v1074
        %v1076 = vmul.f32 %v1071, %v1074
        %v1077 = vmul.f32 %v1072, %v1074
        %v1078 = vmul.f32 %v1073, %v1074
        %v1079 = vadd.f32 %v1013, %v1075
        %v1080 = vadd.f32 %v1014, %v1076
        %v1081 = vadd.f32 %v1015, %v1077
        %v1082 = vadd.f32 %v1016, %v1078
        %v1083 = vrot.slane %v1057, 7
        %v1084 = vrot.slane %v1056, 7
        %v1085 = vrot.slane %v1055, 7
        %v1086 = vrot.slane %v1054, 7
        %v1087 = vsel %vm657, %v1085, %v1086
        %v1088 = vsel %vm657, %v1084, %v1085
        %v1089 = vsel %vm657, %v1083, %v1084
        %v1090 = vsel %vm657, %v1086, %v1083
        %vm1091 = vcmp.ge.s32.totalorder %v644, 14
        %vm1092 = vcmp.ge.s32.totalorder %v645, 14
        %vm1093 = vcmp.ge.s32.totalorder %v646, 14
        %vm1094 = vcmp.ge.s32.totalorder %v647, 14
        %v1095 = vsel %vm1091, 1, 0
        %v1096 = vsel %vm1092, 1, 0
        %v1097 = vsel %vm1093, 1, 0
        %v1098 = vsel %vm1094, 1, 0
        %vm1099 = vcmp.eq.s32.totalorder %v1095, 1
        %vm1100 = vcmp.eq.s32.totalorder %v1096, 1
        %vm1101 = vcmp.eq.s32.totalorder %v1097, 1
        %vm1102 = vcmp.eq.s32.totalorder %v1098, 1
        %v1103 = vsel %vm1099, %v1090, 0.0
        %v1104 = vsel %vm1100, %v1089, 0.0
        %v1105 = vsel %vm1101, %v1088, 0.0
        %v1106 = vsel %vm1102, %v1087, 0.0
        %v1107 = vperm.slane %v594, 6
        %v1108 = vmul.f32 %v1103, %v1107
        %v1109 = vmul.f32 %v1104, %v1107
        %v1110 = vmul.f32 %v1105, %v1107
        %v1111 = vmul.f32 %v1106, %v1107
        %v1112 = vadd.f32 %v1046, %v1108
        %v1113 = vadd.f32 %v1047, %v1109
        %v1114 = vadd.f32 %v1048, %v1110
        %v1115 = vadd.f32 %v1049, %v1111
        %v1116 = vrot.slane %v1090, 7
        %v1117 = vrot.slane %v1089, 7
        %v1118 = vrot.slane %v1088, 7
        %v1119 = vrot.slane %v1087, 7
        %v1120 = vsel %vm657, %v1118, %v1119
        %v1121 = vsel %vm657, %v1117, %v1118
        %v1122 = vsel %vm657, %v1116, %v1117
        %v1123 = vsel %vm657, %v1119, %v1116
        %vm1124 = vcmp.ge.s32.totalorder %v644, 15
        %vm1125 = vcmp.ge.s32.totalorder %v645, 15
        %vm1126 = vcmp.ge.s32.totalorder %v646, 15
        %vm1127 = vcmp.ge.s32.totalorder %v647, 15
        %v1128 = vsel %vm1124, 1, 0
        %v1129 = vsel %vm1125, 1, 0
        %v1130 = vsel %vm1126, 1, 0
        %v1131 = vsel %vm1127, 1, 0
        %vm1132 = vcmp.eq.s32.totalorder %v1128, 1
        %vm1133 = vcmp.eq.s32.totalorder %v1129, 1
        %vm1134 = vcmp.eq.s32.totalorder %v1130, 1
        %vm1135 = vcmp.eq.s32.totalorder %v1131, 1
        %v1136 = vsel %vm1132, %v1123, 0.0
        %v1137 = vsel %vm1133, %v1122, 0.0
        %v1138 = vsel %vm1134, %v1121, 0.0
        %v1139 = vsel %vm1135, %v1120, 0.0
        %v1140 = vperm.slane %v594, 7
        %v1141 = vmul.f32 %v1136, %v1140
        %v1142 = vmul.f32 %v1137, %v1140
        %v1143 = vmul.f32 %v1138, %v1140
        %v1144 = vmul.f32 %v1139, %v1140
        %v1145 = vadd.f32 %v1079, %v1141
        %v1146 = vadd.f32 %v1080, %v1142
        %v1147 = vadd.f32 %v1081, %v1143
        %v1148 = vadd.f32 %v1082, %v1144
        %v1149 = vadd.f32 %v1112, %v1145
        %v1150 = vadd.f32 %v1113, %v1146
        %v1151 = vadd.f32 %v1114, %v1147
        %v1152 = vadd.f32 %v1115, %v1148
        %v1153 = vld [vmem:[%s502] sm:$0x1]
        %v1155 = vperm.slane %v1153, 0
        %v1157 = vmul.f32 %v589, %v1155
        %v1158 = vmul.f32 %v590, %v1155
        %v1159 = vmul.f32 %v591, %v1155
        %v1160 = vmul.f32 %v592, %v1155
        %v1161 = vadd.f32 %v1149, %v1157
        %v1162 = vadd.f32 %v1150, %v1158
        %v1163 = vadd.f32 %v1151, %v1159
        %v1164 = vadd.f32 %v1152, %v1160
        %v1165 = vmul.f32 %v1161, %v1161
        %v1166 = vmul.f32 %v1162, %v1162
        %v1167 = vmul.f32 %v1163, %v1163
        %v1168 = vmul.f32 %v1164, %v1164
        %v1169 = vmul.f32 %v1161, %v1165
        %v1170 = vmul.f32 %v1162, %v1166
        %v1171 = vmul.f32 %v1163, %v1167
        %v1172 = vmul.f32 %v1164, %v1168
        %v1173 = vmul.f32 %v1169, 0.044715
        %v1174 = vmul.f32 %v1170, 0.044715
        %v1175 = vmul.f32 %v1171, 0.044715
        %v1176 = vmul.f32 %v1172, 0.044715
        %v1177 = vadd.f32 %v1161, %v1173
        %v1178 = vadd.f32 %v1162, %v1174
        %v1179 = vadd.f32 %v1163, %v1175
        %v1180 = vadd.f32 %v1164, %v1176
        %v1181 = vmul.f32 %v1177, 0.7978846
        %v1182 = vmul.f32 %v1178, 0.7978846
        %v1183 = vmul.f32 %v1179, 0.7978846
        %v1184 = vmul.f32 %v1180, 0.7978846
        %v1185 = vtanh.pop %v1181
        %v1186 = vtanh.pop %v1182
        %v1187 = vtanh.pop %v1183
        %v1188 = vtanh.pop %v1184
        %v1189 = vadd.f32 %v1185, 1.0
        %v1190 = vadd.f32 %v1186, 1.0
        %v1191 = vadd.f32 %v1187, 1.0
        %v1192 = vadd.f32 %v1188, 1.0
        %v1193 = vmul.f32 %v1189, 0.5
        %v1194 = vmul.f32 %v1190, 0.5
        %v1195 = vmul.f32 %v1191, 0.5
        %v1196 = vmul.f32 %v1192, 0.5
        %v1197 = vmul.f32 %v1161, %v1193
        %v1198 = vmul.f32 %v1162, %v1194
        %v1199 = vmul.f32 %v1163, %v1195
        %v1200 = vmul.f32 %v1164, %v1196
        %v1201 = vpack.c.bf16 %v1198, %v1197
        %v1202 = vpack.c.bf16 %v1200, %v1199
        %v1203 = vld [vmem:[%s507] sm:$0xff]
        %v1204 = vld [vmem:[%s507 + $0x8] sm:$0xff]
        %v1205 = vld [vmem:[%s507 + $0x10] sm:$0xff]
        %v1206 = vld [vmem:[%s507 + $0x18] sm:$0xff]
        %v1207 = vld [vmem:[%s507 + $0x20] sm:$0xff]
        %v1208 = vld [vmem:[%s507 + $0x28] sm:$0xff]
        %v1209 = vld [vmem:[%s507 + $0x30] sm:$0xff]
        %v1210 = vld [vmem:[%s507 + $0x38] sm:$0xff]
        %v1211 = vld [vmem:[%s507 + $0x40] sm:$0xff]
        %v1212 = vld [vmem:[%s507 + $0x48] sm:$0xff]
        %v1213 = vld [vmem:[%s507 + $0x50] sm:$0xff]
        %v1214 = vld [vmem:[%s507 + $0x58] sm:$0xff]
        %v1215 = vld [vmem:[%s507 + $0x60] sm:$0xff]
        %v1216 = vld [vmem:[%s507 + $0x68] sm:$0xff]
        %v1217 = vld [vmem:[%s507 + $0x70] sm:$0xff]
        %v1218 = vld [vmem:[%s507 + $0x78] sm:$0xff]
        %v1219 = vld [vmem:[%s511] sm:$0x3]
        %v1221 = vperm.slane %v1219, 0
        %v1222 = vperm.slane %v1219, 1
        %v1241 = vunpack.c.l.b16 %v1203
        %v1242 = vunpack.c.h.b16 %v1203
        %v1243 = vunpack.c.l.b16 %v1204
        %v1244 = vunpack.c.h.b16 %v1204
        %v1245 = vunpack.c.l.b16 %v1205
        %v1246 = vunpack.c.h.b16 %v1205
        %v1247 = vunpack.c.l.b16 %v1206
        %v1248 = vunpack.c.h.b16 %v1206
        %v1249 = vunpack.c.l.b16 %v1207
        %v1250 = vunpack.c.h.b16 %v1207
        %v1251 = vunpack.c.l.b16 %v1208
        %v1252 = vunpack.c.h.b16 %v1208
        %v1253 = vunpack.c.l.b16 %v1209
        %v1254 = vunpack.c.h.b16 %v1209
        %v1255 = vunpack.c.l.b16 %v1210
        %v1256 = vunpack.c.h.b16 %v1210
        %v1257 = vunpack.c.l.b16 %v1211
        %v1258 = vunpack.c.h.b16 %v1211
        %v1259 = vunpack.c.l.b16 %v1212
        %v1260 = vunpack.c.h.b16 %v1212
        %v1261 = vunpack.c.l.b16 %v1213
        %v1262 = vunpack.c.h.b16 %v1213
        %v1263 = vunpack.c.l.b16 %v1214
        %v1264 = vunpack.c.h.b16 %v1214
        %v1265 = vunpack.c.l.b16 %v1215
        %v1266 = vunpack.c.h.b16 %v1215
        %v1267 = vunpack.c.l.b16 %v1216
        %v1268 = vunpack.c.h.b16 %v1216
        %v1269 = vunpack.c.l.b16 %v1217
        %v1270 = vunpack.c.h.b16 %v1217
        %v1271 = vunpack.c.l.b16 %v1218
        %v1272 = vunpack.c.h.b16 %v1218
        %v1273 = vpack.c.b16 %v1243, %v1241
        %v1274 = vpack.c.b16 %v1244, %v1242
        %v1275 = vpack.c.b16 %v1247, %v1245
        %v1276 = vpack.c.b16 %v1248, %v1246
        %v1277 = vpack.c.b16 %v1251, %v1249
        %v1278 = vpack.c.b16 %v1252, %v1250
        %v1279 = vpack.c.b16 %v1255, %v1253
        %v1280 = vpack.c.b16 %v1256, %v1254
        %v1281 = vpack.c.b16 %v1259, %v1257
        %v1282 = vpack.c.b16 %v1260, %v1258
        %v1283 = vpack.c.b16 %v1263, %v1261
        %v1284 = vpack.c.b16 %v1264, %v1262
        %v1285 = vpack.c.b16 %v1267, %v1265
        %v1286 = vpack.c.b16 %v1268, %v1266
        %v1287 = vpack.c.b16 %v1271, %v1269
        %v1288 = vpack.c.b16 %v1272, %v1270
        %1305 = vmatpush.bf16.msra.mxu0 %v1287
        %1306 = vmatpush.bf16.msra.mxu0 %v1285
        %1307 = vmatpush.bf16.msra.mxu0 %v1283
        %1308 = vmatpush.bf16.msra.mxu0 %v1281
        %1309 = vmatpush.bf16.msra.mxu0 %v1279
        %1310 = vmatpush.bf16.msra.mxu0 %v1277
        %1311 = vmatpush.bf16.msra.mxu0 %v1275
        %1312 = vmatpush.bf16.msra.mxu0 %v1273
        %1313 = vmatmul.bf16.gmra.mxu0 %v1201
        %v1314 = vpop.f32.mrf.mxu0
        %v1315 = vadd.f32 %v1221, %v1314
        %v1316 = vpop.f32.mrf.mxu0
        %v1317 = vadd.f32 %v1221, %v1316
        %1318 = vmatmul.bf16.gmra.mxu0 %v1202
        %v1319 = vpop.f32.mrf.mxu0
        %v1320 = vadd.f32 %v1221, %v1319
        %v1321 = vpop.f32.mrf.mxu0
        %v1322 = vadd.f32 %v1221, %v1321
        %1323 = vdwg.mxu0
        %1324 = vmatpush.bf16.msra.mxu0 %v1288
        %1325 = vmatpush.bf16.msra.mxu0 %v1286
        %1326 = vmatpush.bf16.msra.mxu0 %v1284
        %1327 = vmatpush.bf16.msra.mxu0 %v1282
        %1328 = vmatpush.bf16.msra.mxu0 %v1280
        %1329 = vmatpush.bf16.msra.mxu0 %v1278
        %1330 = vmatpush.bf16.msra.mxu0 %v1276
        %1331 = vmatpush.bf16.msra.mxu0 %v1274
        %1332 = vmatmul.bf16.gmra.mxu0 %v1201
        %v1333 = vpop.f32.mrf.mxu0
        %v1334 = vadd.f32 %v1222, %v1333
        %v1335 = vpop.f32.mrf.mxu0
        %v1336 = vadd.f32 %v1222, %v1335
        %1337 = vmatmul.bf16.gmra.mxu0 %v1202
        %v1338 = vpop.f32.mrf.mxu0
        %v1339 = vadd.f32 %v1222, %v1338
        %v1340 = vpop.f32.mrf.mxu0
        %v1341 = vadd.f32 %v1222, %v1340
        %1342 = vdwg.mxu0
        %v1343 = vxor.u32 %v1334, 2147483648
        %v1344 = vxor.u32 %v1336, 2147483648
        %v1345 = vxor.u32 %v1339, 2147483648
        %v1346 = vxor.u32 %v1341, 2147483648
        %v1347 = vmul.f32 %v1343, 1.442695
        %v1348 = vpow.pop %v1347
        %v1349 = vmul.f32 %v1344, 1.442695
        %v1350 = vpow.pop %v1349
        %v1351 = vmul.f32 %v1345, 1.442695
        %v1352 = vpow.pop %v1351
        %v1353 = vmul.f32 %v1346, 1.442695
        %v1354 = vpow.pop %v1353
        %v1355 = vadd.f32 %v1348, 1.0
        %v1356 = vadd.f32 %v1350, 1.0
        %v1357 = vadd.f32 %v1352, 1.0
        %v1358 = vadd.f32 %v1354, 1.0
        %v1359 = vrcp.pop %v1355
        %v1360 = vmul.f32 %v1355, %v1359
        %v1361 = vsub.f32 1.0, %v1360
        %v1362 = vmul.f32 %v1359, %v1361
        %v1363 = vadd.f32 %v1359, %v1362
        %vm1364 = vweird.f32 %v1355
        %vm1365 = vweird.f32 %v1359
        %vm1366 = vmor %vm1364, %vm1365
        %v1367 = vsel %vm1366, %v1359, %v1363
        %v1368 = vand.u32 2147483647, %v1355
        %vm1369 = vcmp.eq.f32.partialorder %v1368, 8.507059e+37
        %v1370 = vand.u32 %v1355, 2147483648
        %v1371 = vor.u32 1.1754944e-38, %v1370
        %v1372 = vsel %vm1369, %v1371, %v1367
        %v1373 = vmul.f32 1.0, %v1372
        %v1374 = vrcp.pop %v1356
        %v1375 = vmul.f32 %v1356, %v1374
        %v1376 = vsub.f32 1.0, %v1375
        %v1377 = vmul.f32 %v1374, %v1376
        %v1378 = vadd.f32 %v1374, %v1377
        %vm1379 = vweird.f32 %v1356
        %vm1380 = vweird.f32 %v1374
        %vm1381 = vmor %vm1379, %vm1380
        %v1382 = vsel %vm1381, %v1374, %v1378
        %v1383 = vand.u32 2147483647, %v1356
        %vm1384 = vcmp.eq.f32.partialorder %v1383, 8.507059e+37
        %v1385 = vand.u32 %v1356, 2147483648
        %v1386 = vor.u32 1.1754944e-38, %v1385
        %v1387 = vsel %vm1384, %v1386, %v1382
        %v1388 = vmul.f32 1.0, %v1387
        %v1389 = vrcp.pop %v1357
        %v1390 = vmul.f32 %v1357, %v1389
        %v1391 = vsub.f32 1.0, %v1390
        %v1392 = vmul.f32 %v1389, %v1391
        %v1393 = vadd.f32 %v1389, %v1392
        %vm1394 = vweird.f32 %v1357
        %vm1395 = vweird.f32 %v1389
        %vm1396 = vmor %vm1394, %vm1395
        %v1397 = vsel %vm1396, %v1389, %v1393
        %v1398 = vand.u32 2147483647, %v1357
        %vm1399 = vcmp.eq.f32.partialorder %v1398, 8.507059e+37
        %v1400 = vand.u32 %v1357, 2147483648
        %v1401 = vor.u32 1.1754944e-38, %v1400
        %v1402 = vsel %vm1399, %v1401, %v1397
        %v1403 = vmul.f32 1.0, %v1402
        %v1404 = vrcp.pop %v1358
        %v1405 = vmul.f32 %v1358, %v1404
        %v1406 = vsub.f32 1.0, %v1405
        %v1407 = vmul.f32 %v1404, %v1406
        %v1408 = vadd.f32 %v1404, %v1407
        %vm1409 = vweird.f32 %v1358
        %vm1410 = vweird.f32 %v1404
        %vm1411 = vmor %vm1409, %vm1410
        %v1412 = vsel %vm1411, %v1404, %v1408
        %v1413 = vand.u32 2147483647, %v1358
        %vm1414 = vcmp.eq.f32.partialorder %v1413, 8.507059e+37
        %v1415 = vand.u32 %v1358, 2147483648
        %v1416 = vor.u32 1.1754944e-38, %v1415
        %v1417 = vsel %vm1414, %v1416, %v1412
        %v1418 = vmul.f32 1.0, %v1417
        %v1419 = vmul.f32 %v1315, %v1373
        %v1420 = vmul.f32 %v1317, %v1388
        %v1421 = vmul.f32 %v1320, %v1403
        %v1422 = vmul.f32 %v1322, %v1418
        %v1423 = vadd.f32 %v1419, %v589
        %v1424 = vadd.f32 %v1420, %v590
        %v1425 = vadd.f32 %v1421, %v591
        %v1426 = vadd.f32 %v1422, %v592
        %1427 = vadd.xlane.f32.xlu0 %v1423
        %v1428 = vpop.xlane.xlu0 %1427
        %1429 = vadd.xlane.f32.xlu0 %v1424
        %v1430 = vpop.xlane.xlu0 %1429
        %1431 = vadd.xlane.f32.xlu0 %v1425
        %v1432 = vpop.xlane.xlu0 %1431
        %1433 = vadd.xlane.f32.xlu0 %v1426
        %v1434 = vpop.xlane.xlu0 %1433
        %v1435 = vmul.f32 %v1428, 0.03125
        %v1436 = vmul.f32 %v1430, 0.03125
        %v1437 = vmul.f32 %v1432, 0.03125
        %v1438 = vmul.f32 %v1434, 0.03125
        %v1439 = vmul.f32 %v1423, %v1423
        %v1440 = vmul.f32 %v1424, %v1424
        %v1441 = vmul.f32 %v1425, %v1425
        %v1442 = vmul.f32 %v1426, %v1426
        %1443 = vadd.xlane.f32.xlu0 %v1439
        %v1444 = vpop.xlane.xlu0 %1443
        %1445 = vadd.xlane.f32.xlu0 %v1440
        %v1446 = vpop.xlane.xlu0 %1445
        %1447 = vadd.xlane.f32.xlu0 %v1441
        %v1448 = vpop.xlane.xlu0 %1447
        %1449 = vadd.xlane.f32.xlu0 %v1442
        %v1450 = vpop.xlane.xlu0 %1449
        %v1451 = vmul.f32 %v1444, 0.03125
        %v1452 = vmul.f32 %v1446, 0.03125
        %v1453 = vmul.f32 %v1448, 0.03125
        %v1454 = vmul.f32 %v1450, 0.03125
        %v1455 = vmul.f32 %v1435, %v1435
        %v1456 = vmul.f32 %v1436, %v1436
        %v1457 = vmul.f32 %v1437, %v1437
        %v1458 = vmul.f32 %v1438, %v1438
        %v1459 = vsub.f32 %v1451, %v1455
        %v1460 = vsub.f32 %v1452, %v1456
        %v1461 = vsub.f32 %v1453, %v1457
        %v1462 = vsub.f32 %v1454, %v1458
        %v1463 = vsub.f32 %v1423, %v1435
        %v1464 = vsub.f32 %v1424, %v1436
        %v1465 = vsub.f32 %v1425, %v1437
        %v1466 = vsub.f32 %v1426, %v1438
        %v1467 = vadd.f32 %v1459, 1e-05
        %v1468 = vadd.f32 %v1460, 1e-05
        %v1469 = vadd.f32 %v1461, 1e-05
        %v1470 = vadd.f32 %v1462, 1e-05
        %v1471 = vrsqrt.pop %v1467
        %v1472 = vmul.f32 %v1471, %v1467
        %v1473 = vmul.f32 %v1472, %v1471
        %v1474 = vmul.f32 0.5, %v1473
        %v1475 = vsub.f32 1.5, %v1474
        %v1476 = vmul.f32 %v1471, %v1475
        %vm1477 = vweird.f32 %v1467
        %vm1478 = vweird.f32 %v1471
        %vm1479 = vmor %vm1477, %vm1478
        %v1480 = vsel %vm1479, %v1471, %v1476
        %v1481 = vrsqrt.pop %v1468
        %v1482 = vmul.f32 %v1481, %v1468
        %v1483 = vmul.f32 %v1482, %v1481
        %v1484 = vmul.f32 0.5, %v1483
        %v1485 = vsub.f32 1.5, %v1484
        %v1486 = vmul.f32 %v1481, %v1485
        %vm1487 = vweird.f32 %v1468
        %vm1488 = vweird.f32 %v1481
        %vm1489 = vmor %vm1487, %vm1488
        %v1490 = vsel %vm1489, %v1481, %v1486
        %v1491 = vrsqrt.pop %v1469
        %v1492 = vmul.f32 %v1491, %v1469
        %v1493 = vmul.f32 %v1492, %v1491
        %v1494 = vmul.f32 0.5, %v1493
        %v1495 = vsub.f32 1.5, %v1494
        %v1496 = vmul.f32 %v1491, %v1495
        %vm1497 = vweird.f32 %v1469
        %vm1498 = vweird.f32 %v1491
        %vm1499 = vmor %vm1497, %vm1498
        %v1500 = vsel %vm1499, %v1491, %v1496
        %v1501 = vrsqrt.pop %v1470
        %v1502 = vmul.f32 %v1501, %v1470
        %v1503 = vmul.f32 %v1502, %v1501
        %v1504 = vmul.f32 0.5, %v1503
        %v1505 = vsub.f32 1.5, %v1504
        %v1506 = vmul.f32 %v1501, %v1505
        %vm1507 = vweird.f32 %v1470
        %vm1508 = vweird.f32 %v1501
        %vm1509 = vmor %vm1507, %vm1508
        %v1510 = vsel %vm1509, %v1501, %v1506
        %v1511 = vmul.f32 %v1463, %v1480
        %v1512 = vmul.f32 %v1464, %v1490
        %v1513 = vmul.f32 %v1465, %v1500
        %v1514 = vmul.f32 %v1466, %v1510
        %v1515 = vld [vmem:[%s514] sm:$0x1]
        %v1517 = vperm.slane %v1515, 0
        %v1519 = vmul.f32 %v1511, %v1517
        %v1520 = vmul.f32 %v1512, %v1517
        %v1521 = vmul.f32 %v1513, %v1517
        %v1522 = vmul.f32 %v1514, %v1517
        %v1523 = vld [vmem:[%s517] sm:$0x1]
        %v1525 = vperm.slane %v1523, 0
        %v1527 = vadd.f32 %v1519, %v1525
        %v1528 = vadd.f32 %v1520, %v1525
        %v1529 = vadd.f32 %v1521, %v1525
        %v1530 = vadd.f32 %v1522, %v1525
        %1531 = vst [vmem:[#allocation2] sm:$0xff] %v1527
        %1532 = vst [vmem:[#allocation2 + $0x8] sm:$0xff] %v1528
        %1533 = vst [vmem:[#allocation2 + $0x10] sm:$0xff] %v1529
        %1534 = vst [vmem:[#allocation2 + $0x18] sm:$0xff] %v1530
        %p1535 = scmp.eq.s32.totalorder %s29, 1
        // Predicated region
        $region73: #{s4_model_forward.1} parent=67 // pred_check
          %p1536 = pneg %p1535
        $region74: #{s4_model_forward.1} parent=67 // pred_check_branch
          %1538 = sbr.rel (%p1536) target = $region76
        $region75: #{s4_model_forward.1} parent=67 // pred_region
          %v1539 = vld [vmem:[%s1] sm:$0x3]
          %vm1540 = vcmask 261120
          %v1542 = vsel %vm1540, %v1539, 0
          %1544 = vmatpush.msra.mxu0 0.0
          %1545 = vmatpush.msra.mxu0 0.0
          %1546 = vmatpush.msra.mxu0 0.0
          %1547 = vmatpush.msra.mxu0 0.0
          %1548 = vmatpush.msra.mxu0 0.0
          %1549 = vmatpush.msra.mxu0 0.0
          %1550 = vmatpush.msra.mxu0 0.0
          %1551 = vmatpush.msra.mxu0 0.0
          %1552 = vmatpush.msra.mxu0 0.0
          %1553 = vmatpush.msra.mxu0 0.0
          %1554 = vmatpush.msra.mxu0 0.0
          %1555 = vmatpush.msra.mxu0 0.0
          %1556 = vmatpush.msra.mxu0 %v1530
          %1557 = vmatpush.msra.mxu0 %v1529
          %1558 = vmatpush.msra.mxu0 %v1528
          %1559 = vmatpush.msra.mxu0 %v1527
          %1560 = vmatmul.f32.gmra.mxu0 %v1542
          %v1561 = vpop.f32.mrf.mxu0
          %v1562 = vadd.f32 0.0, %v1561
          %1563 = vdwg.mxu0
          %v1564 = vpack.c.bf16 %v1562, %v1562
          %v1565 = vld [vmem:[%s10] sm:$0xf]
          %v1566 = vld [vmem:[%s10 + $0x4] sm:$0xf]
          %v1567 = vld [vmem:[%s10 + $0x8] sm:$0xf]
          %v1568 = vld [vmem:[%s10 + $0xc] sm:$0xf]
          %v1569 = vld [vmem:[%s10 + $0x10] sm:$0xf]
          %v1570 = vld [vmem:[%s10 + $0x14] sm:$0xf]
          %v1571 = vld [vmem:[%s10 + $0x18] sm:$0xf]
          %v1572 = vld [vmem:[%s10 + $0x1c] sm:$0xf]
          %v1573 = vld [vmem:[%s10 + $0x20] sm:$0xf]
          %v1574 = vld [vmem:[%s10 + $0x24] sm:$0xf]
          %v1575 = vld [vmem:[%s10 + $0x28] sm:$0xf]
          %v1576 = vld [vmem:[%s10 + $0x2c] sm:$0xf]
          %v1577 = vld [vmem:[%s10 + $0x30] sm:$0xf]
          %v1578 = vld [vmem:[%s10 + $0x34] sm:$0xf]
          %v1579 = vld [vmem:[%s10 + $0x38] sm:$0xf]
          %v1580 = vld [vmem:[%s10 + $0x3c] sm:$0xf]
          %v1581 = vld [vmem:[%s11] sm:$0x1]
          %v1583 = vperm.slane %v1581, 0
          %v1601 = vunpack.c.l.b16 %v1565
          %v1602 = vunpack.c.l.b16 %v1566
          %v1603 = vunpack.c.l.b16 %v1567
          %v1604 = vunpack.c.l.b16 %v1568
          %v1605 = vunpack.c.l.b16 %v1569
          %v1606 = vunpack.c.l.b16 %v1570
          %v1607 = vunpack.c.l.b16 %v1571
          %v1608 = vunpack.c.l.b16 %v1572
          %v1609 = vunpack.c.l.b16 %v1573
          %v1610 = vunpack.c.l.b16 %v1574
          %v1611 = vunpack.c.l.b16 %v1575
          %v1612 = vunpack.c.l.b16 %v1576
          %v1613 = vunpack.c.l.b16 %v1577
          %v1614 = vunpack.c.l.b16 %v1578
          %v1615 = vunpack.c.l.b16 %v1579
          %v1616 = vunpack.c.l.b16 %v1580
          %v1617 = vpack.c.b16 %v1602, %v1601
          %v1618 = vpack.c.b16 %v1604, %v1603
          %v1619 = vpack.c.b16 %v1606, %v1605
          %v1620 = vpack.c.b16 %v1608, %v1607
          %v1621 = vpack.c.b16 %v1610, %v1609
          %v1622 = vpack.c.b16 %v1612, %v1611
          %v1623 = vpack.c.b16 %v1614, %v1613
          %v1624 = vpack.c.b16 %v1616, %v1615
          %1633 = vmatpush.bf16.msra.mxu0 %v1624
          %1634 = vmatpush.bf16.msra.mxu0 %v1623
          %1635 = vmatpush.bf16.msra.mxu0 %v1622
          %1636 = vmatpush.bf16.msra.mxu0 %v1621
          %1637 = vmatpush.bf16.msra.mxu0 %v1620
          %1638 = vmatpush.bf16.msra.mxu0 %v1619
          %1639 = vmatpush.bf16.msra.mxu0 %v1618
          %1640 = vmatpush.bf16.msra.mxu0 %v1617
          %1641 = vmatmul.bf16.gmra.mxu0 %v1564
          %v1642 = vpop.f32.mrf.mxu0
          %v1643 = vadd.f32 %v1583, %v1642
          %v1644 = vpop.f32.mrf.mxu0
          %1645 = vdwg.mxu0
          %1646 = vst [vmem:[#allocation3] sm:$0x3] %v1643
        $region76: #{s4_model_forward.1} parent=67 // pred_fallthru
          _
        // Predicated region
        $region77: #{s4_model_forward.1} parent=67 // pred_check
          %p1647 = pneg %p341
        $region78: #{s4_model_forward.1} parent=67 // pred_check_branch
          %1649 = sbr.rel (%p1647) target = $region80
        $region79: #{s4_model_forward.1} parent=67 // pred_region
          %1651 = vsyncadd [#allocation4], 0
          %s1652 = smul.addr %s28, 2
          %s1653 = scalar_lea.hbm %s12, %s1652
          %s1655 = sshll.u32 [#allocation3], 4
          %s1656 = int_to_ptr.vmem [resolvable:$true] %s1655
          %s1657 = sshll.u32 %s1653, 4
          %s1658 = int_to_ptr.hbm [resolvable:$true] %s1657
          %1660 = dma.vmem_to_hbm [thread:$0]  %s1656, 32, %s1658, [#allocation4]
        $region80: #{s4_model_forward.1} parent=67 // pred_fallthru
          _
        // Predicated region
        $region81: #{s4_model_forward.1} parent=67 // pred_check
          %p1661 = pneg %p341
        $region82: #{s4_model_forward.1} parent=67 // pred_check_branch
          %1663 = sbr.rel (%p1661) target = $region84
        $region83: #{s4_model_forward.1} parent=67 // pred_region
          %1665 = dma.done [#allocation4], 32
        $region84: #{s4_model_forward.1} parent=67 // pred_fallthru
          _
      $region68: #{s4_model_forward.1} parent=5 // pred_fallthru
        _
      %p1666 = scmp.le.s32.totalorder 2, %s19
      // Predicated region
      $region85: #{s4_model_forward.1} parent=5 // pred_check
        %p1667 = pneg %p1666
      $region86: #{s4_model_forward.1} parent=5 // pred_check_branch
        %1669 = sbr.rel (%p1667) target = $region88
      $region87: #{s4_model_forward.1} parent=5 // pred_region
        %s1670 = ssub.s32 %s19, 2
      $region88: #{s4_model_forward.1} parent=5 // pred_fallthru
        _
    $region6: #{s4_model_forward.1} parent=1 // loop_footer
      %s23 = sadd.s32 1, %s19
    $region7: #{s4_model_forward.1} parent=1 // loop_footer_branch
      %18 = sbr.rel target = $region3
    $region8: #{s4_model_forward.1} parent=1 // loop_exit
      _
    %1671 = vsyncpa [#allocation4], 1
    %s1672 = scalar_lea.sflag [#allocation4], 1
    %1673 = vsyncpa %s1672, 1

</llo_original>
